<compile_context>
chip_gen: v7x
topology: tpu7x:2x2x1
jax: 0.10.0
libtpu: 0.0.40
codegen_flags: <defaults>
</compile_context>

<pallas_src>
import functools

import jax
import jax.numpy as jnp
from jax import lax
from jax.experimental import pallas as pl
from jax.experimental.pallas import tpu as pltpu


# --------------------------------------------------------------------------
# Small helper: largest divisor of `dim` that is a multiple of `quantum` and
# <= cap; falls back to the full dim (full-extent blocks are always legal).
# --------------------------------------------------------------------------
def _pick_tile(dim, quantum, cap):
    best = None
    t = quantum
    limit = min(dim, cap)
    while t <= limit:
        if dim % t == 0:
            best = t
        t += quantum
    return best if best is not None else dim


_VMEM_LIMIT = 32 * 1024 * 1024  # safe on v5e/v6e/v7x; far above actual usage


# --------------------------------------------------------------------------
# Kernel 1: channel mixing (BroadcastedLinear, bias=False)
#   y = einsum('oi,bihw->bohw')  computed as  y[b] = W @ x[b]  on (Ci, H*W).
# --------------------------------------------------------------------------
def _linear_kernel(w_ref, x_ref, o_ref):
    # w_ref: (Co, Ci), x_ref: (1, Ci, Ts), o_ref: (1, Co, Ts)  -- lane axis = spatial
    o_ref[0] = jnp.dot(
        w_ref[...], x_ref[0], preferred_element_type=jnp.float32
    ).astype(o_ref.dtype)


def channel_linear(x_nchw, w_oi, *, max_tile_s=2048):
    B, C, H, W = x_nchw.shape
    Co, Ci = w_oi.shape
    S = H * W
    tile_s = _pick_tile(S, 128, max_tile_s)
    x_bcs = x_nchw.reshape(B, Ci, S)  # contiguous reshape, no transpose / HBM pass

    y_bcs = pl.pallas_call(
        _linear_kernel,
        out_shape=jax.ShapeDtypeStruct((B, Co, S), x_nchw.dtype),
        grid_spec=pltpu.PrefetchScalarGridSpec(
            num_scalar_prefetch=0,
            grid=(B, S // tile_s),
            in_specs=[
                pl.BlockSpec((Co, Ci), lambda b, s: (0, 0)),
                pl.BlockSpec((1, Ci, tile_s), lambda b, s: (b, 0, s)),
            ],
            out_specs=pl.BlockSpec((1, Co, tile_s), lambda b, s: (b, 0, s)),
        ),
        compiler_params=pltpu.CompilerParams(
            dimension_semantics=("parallel", "parallel"),
            vmem_limit_bytes=_VMEM_LIMIT,
        ),
    )(w_oi, x_bcs)
    return y_bcs.reshape(B, Co, H, W)


# --------------------------------------------------------------------------
# Kernel 2: spectral mixing  y[b,o,f] = sum_i x[b,i,f] * w[i,o,f]   (complex)
#   i.e. torch.einsum("aicd,iocd->aocd", x, w) with (c,d) flattened to f.
# Complex arithmetic is done explicitly on (re, im) planes; the mode axis f is
# lane-dense (padded to a multiple of 128) and gridded.
# --------------------------------------------------------------------------
def _spectral_kernel(xr_ref, xi_ref, wr_ref, wi_ref, or_ref, oi_ref):
    # xr/xi: (Ci, B, Ft), wr/wi: (Ci, Co, Ft), or/oi: (B, Co, Ft)
    Ci = xr_ref.shape[0]

    def body(i, carry):
        yr, yi = carry
        xr = xr_ref[i][:, None, :]   # (B, 1, Ft)   leading-axis dynamic read
        xi = xi_ref[i][:, None, :]
        wr = wr_ref[i][None, :, :]   # (1, Co, Ft)
        wi = wi_ref[i][None, :, :]
        yr = yr + xr * wr - xi * wi
        yi = yi + xr * wi + xi * wr
        return yr, yi

    yr0 = jnp.zeros(or_ref.shape, jnp.float32)
    yi0 = jnp.zeros(oi_ref.shape, jnp.float32)
    unroll = True if Ci <= 16 else 4
    yr, yi = lax.fori_loop(0, Ci, body, (yr0, yi0), unroll=unroll)
    or_ref[...] = yr
    oi_ref[...] = yi


def spectral_conv(xr, xi, wr, wi, *, max_tile_f=512):
    # xr/xi: (B, Ci, F); wr/wi: (Ci, Co, F)  ->  (B, Co, F) re/im
    B, Ci, F = xr.shape
    Co = wr.shape[1]
    F_pad = max(128, ((F + 127) // 128) * 128)   # lane-dense mode axis
    pad = F_pad - F

    xr_t = jnp.transpose(xr, (1, 0, 2))          # (Ci, B, F): loop axis leading
    xi_t = jnp.transpose(xi, (1, 0, 2))
    if pad:
        xr_t = jnp.pad(xr_t, ((0, 0), (0, 0), (0, pad)))
        xi_t = jnp.pad(xi_t, ((0, 0), (0, 0), (0, pad)))
        wr = jnp.pad(wr, ((0, 0), (0, 0), (0, pad)))
        wi = jnp.pad(wi, ((0, 0), (0, 0), (0, pad)))
    tile_f = _pick_tile(F_pad, 128, max_tile_f)

    yr, yi = pl.pallas_call(
        _spectral_kernel,
        out_shape=(
            jax.ShapeDtypeStruct((B, Co, F_pad), jnp.float32),
            jax.ShapeDtypeStruct((B, Co, F_pad), jnp.float32),
        ),
        grid_spec=pltpu.PrefetchScalarGridSpec(
            num_scalar_prefetch=0,
            grid=(F_pad // tile_f,),
            in_specs=[
                pl.BlockSpec((Ci, B, tile_f), lambda f: (0, 0, f)),
                pl.BlockSpec((Ci, B, tile_f), lambda f: (0, 0, f)),
                pl.BlockSpec((Ci, Co, tile_f), lambda f: (0, 0, f)),
                pl.BlockSpec((Ci, Co, tile_f), lambda f: (0, 0, f)),
            ],
            out_specs=(
                pl.BlockSpec((B, Co, tile_f), lambda f: (0, 0, f)),
                pl.BlockSpec((B, Co, tile_f), lambda f: (0, 0, f)),
            ),
        ),
        compiler_params=pltpu.CompilerParams(
            dimension_semantics=("parallel",),
            vmem_limit_bytes=_VMEM_LIMIT,
        ),
    )(xr_t, xi_t, wr, wi)
    return yr[:, :, :F], yi[:, :, :F]


# --------------------------------------------------------------------------
# Kernel 3: fused  out = GELU(y0 + y)   (exact / erf GELU, like F.gelu default)
# --------------------------------------------------------------------------
def _erf_f32(x):
    # Abramowitz & Stegun 7.1.26, |err| < 1.5e-7; divide routed to the EUP.
    a1, a2, a3, a4, a5 = 0.254829592, -0.284496736, 1.421413741, -1.453152027, 1.061405429
    p = 0.3275911
    sgn = jnp.where(x >= 0.0, 1.0, -1.0)
    ax = jnp.abs(x)
    t = pl.reciprocal(1.0 + p * ax, approx=True)
    poly = ((((a5 * t + a4) * t + a3) * t + a2) * t + a1) * t
    return sgn * (1.0 - poly * jnp.exp(-ax * ax))


def _add_gelu_kernel(a_ref, b_ref, o_ref):
    z = (a_ref[...] + b_ref[...]).astype(jnp.float32)
    o_ref[...] = (0.5 * z * (1.0 + _erf_f32(z * 0.7071067811865476))).astype(o_ref.dtype)


def add_gelu(a, b, *, max_tile_r=512, max_tile_c=2048):
    B, C, H, W = a.shape
    rows, cols = B * C, H * W           # lane-dense last dim = H*W
    a2 = a.reshape(rows, cols)
    b2 = b.reshape(rows, cols)
    tile_r = _pick_tile(rows, 8, max_tile_r)
    tile_c = _pick_tile(cols, 128, max_tile_c)

    out = pl.pallas_call(
        _add_gelu_kernel,
        out_shape=jax.ShapeDtypeStruct((rows, cols), a.dtype),
        grid_spec=pltpu.PrefetchScalarGridSpec(
            num_scalar_prefetch=0,
            grid=(rows // tile_r, cols // tile_c),
            in_specs=[
                pl.BlockSpec((tile_r, tile_c), lambda i, j: (i, j)),
                pl.BlockSpec((tile_r, tile_c), lambda i, j: (i, j)),
            ],
            out_specs=pl.BlockSpec((tile_r, tile_c), lambda i, j: (i, j)),
        ),
        compiler_params=pltpu.CompilerParams(
            dimension_semantics=("parallel", "parallel"),
            vmem_limit_bytes=_VMEM_LIMIT,
        ),
    )(a2, b2)
    return out.reshape(B, C, H, W)


# --------------------------------------------------------------------------
# Full DistributedFNOBlock forward (n = 2 spatial dims, single device)
# --------------------------------------------------------------------------
def dfno_block_forward(x, w_lin, w_spec_re, w_spec_im, *, modes):
    B, C, H, W = x.shape
    m0, m1 = modes

    # y0 = BroadcastedLinear(width, width, bias=False, dim=1)  -> Pallas MXU kernel
    y0 = channel_linear(x, w_lin)

    # ---- spectral branch ----
    xf = jnp.fft.rfft(x, axis=3)                 # (B,C,H,W//2+1) complex64
    full_w = xf.shape[3]
    xf = xf[:, :, :, :m1]                        # restrict dim 3 (prefix only; rfft dim)
    xf = jnp.fft.fft(xf, axis=2)                 # (B,C,H,m1)
    xf = jnp.concatenate([xf[:, :, :m0, :], xf[:, :, H - m0:, :]], axis=2)  # prefix+suffix

    F = 2 * m0 * m1
    xr = jnp.real(xf).reshape(B, C, F).astype(jnp.float32)
    xi = jnp.imag(xf).reshape(B, C, F).astype(jnp.float32)
    wr = w_spec_re.reshape(C, C, F)
    wi = w_spec_im.reshape(C, C, F)
    yr, yi = spectral_conv(xr, xi, wr, wi)       # Pallas: per-mode channel mixing
    yf = (yr + 1j * yi).astype(jnp.complex64).reshape(B, C, 2 * m0, m1)

    # zeropad dim 2 back to H, inverse FFT along dim 2
    pad2 = H - 2 * m0
    if pad2 >= 1:
        yf = jnp.concatenate(
            [yf[:, :, :m0, :], jnp.zeros((B, C, pad2, m1), yf.dtype), yf[:, :, -m0:, :]],
            axis=2)
    yf = jnp.fft.ifft(yf, axis=2)

    # zeropad dim 3 back to W//2+1, inverse rfft along dim 3
    pad3 = full_w - m1
    if pad3 >= 1:
        yf = jnp.concatenate(
            [yf[:, :, :, :m1], jnp.zeros((B, C, H, pad3), yf.dtype)], axis=3)
    # Note: n=2*(full_w-1) matches torch.fft.irfft's default (assumes even W).
    y = jnp.fft.irfft(yf, n=2 * (full_w - 1), axis=3).astype(x.dtype)

    # F.gelu(y0 + y)  -> fused Pallas elementwise kernel (exact erf GELU)
    return add_gelu(y0, y)


# --------------------------------------------------------------------------
# Pure-JAX reference (same math, no Pallas) for a sanity check.
# --------------------------------------------------------------------------
def reference_forward(x, w_lin, w_spec_re, w_spec_im, *, modes):
    B, C, H, W = x.shape
    m0, m1 = modes
    y0 = jnp.einsum("oi,bihw->bohw", w_lin, x)
    xf = jnp.fft.rfft(x, axis=3)
    full_w = xf.shape[3]
    xf = xf[:, :, :, :m1]
    xf = jnp.fft.fft(xf, axis=2)
    xf = jnp.concatenate([xf[:, :, :m0, :], xf[:, :, H - m0:, :]], axis=2)
    wc = (w_spec_re + 1j * w_spec_im).astype(xf.dtype)
    yf = jnp.einsum("aicd,iocd->aocd", xf, wc)
    pad2 = H - 2 * m0
    if pad2 >= 1:
        yf = jnp.concatenate(
            [yf[:, :, :m0, :], jnp.zeros((B, C, pad2, m1), yf.dtype), yf[:, :, -m0:, :]],
            axis=2)
    yf = jnp.fft.ifft(yf, axis=2)
    pad3 = full_w - m1
    if pad3 >= 1:
        yf = jnp.concatenate(
            [yf[:, :, :, :m1], jnp.zeros((B, C, H, pad3), yf.dtype)], axis=3)
    y = jnp.fft.irfft(yf, n=2 * (full_w - 1), axis=3).astype(x.dtype)
    return jax.nn.gelu(y0 + y, approximate=False)


if __name__ == "__main__":
    # Small shapes consistent with the module: P_x.dim = 4 -> n = 2 spatial dims.
    B, C, H, W = 2, 8, 16, 16          # in_shape = (B, width, H, W), width = 8
    modes = (4, 4)

    key = jax.random.PRNGKey(0)
    k_x, k_w, k1r, k1i, k2r, k2i = jax.random.split(key, 6)

    x = jax.random.normal(k_x, (B, C, H, W), jnp.float32)

    # BroadcastedLinear weight (out, in); kaiming_uniform(a=sqrt(5)) -> U(-1/sqrt(fan_in), ..)
    bound = 1.0 / (C ** 0.5)
    w_lin = jax.random.uniform(k_w, (C, C), jnp.float32, -bound, bound)

    # Two spectral weights (one per frequency "corner", 2**(n-1) = 2 for n = 2),
    # each (width, width, modes0, modes1) complex; scale = 1/(width*width).
    # Their slices exactly tile the restricted spectrum along dim 2, so we
    # concatenate them along that dim and run one spectral-mixing kernel.
    scale = 1.0 / (C * C)
    m0, m1 = modes
    w0_re = scale * jax.random.uniform(k1r, (C, C, m0, m1), jnp.float32)
    w0_im = scale * jax.random.uniform(k1i, (C, C, m0, m1), jnp.float32)
    w1_re = scale * jax.random.uniform(k2r, (C, C, m0, m1), jnp.float32)
    w1_im = scale * jax.random.uniform(k2i, (C, C, m0, m1), jnp.float32)
    w_spec_re = jnp.concatenate([w0_re, w1_re], axis=2)   # (C, C, 2*m0, m1)
    w_spec_im = jnp.concatenate([w0_im, w1_im], axis=2)

    fwd = jax.jit(functools.partial(dfno_block_forward, modes=modes))
    out = fwd(x, w_lin, w_spec_re, w_spec_im)
    out = jax.block_until_ready(out)

    ref = reference_forward(x, w_lin, w_spec_re, w_spec_im, modes=modes)
    assert out.shape == (B, C, H, W) and out.dtype == jnp.float32
    max_err = float(jnp.max(jnp.abs(out - ref)))
    assert max_err < 1e-2, f"mismatch vs reference: {max_err}"

    print("KERNEL_OK")
</pallas_src>

<mosaic_0001>
module attributes {stable_mosaic.version = 11 : i64} {
  func.func @_spectral_kernel(%arg0: i32, %arg1: memref<8x2x128xf32, #tpu.memory_space<vmem>>, %arg2: memref<8x2x128xf32, #tpu.memory_space<vmem>>, %arg3: memref<8x8x128xf32, #tpu.memory_space<vmem>>, %arg4: memref<8x8x128xf32, #tpu.memory_space<vmem>>, %arg5: memref<2x8x128xf32, #tpu.memory_space<vmem>>, %arg6: memref<2x8x128xf32, #tpu.memory_space<vmem>>) attributes {dimension_semantics = [#tpu.dimension_semantics<parallel>], iteration_bounds = array<i64: 1>, scalar_prefetch = 0 : i64, scratch_operands = 0 : i64, tpu.core_type = #tpu.core_type<tc>, window_params = [{transform_indices = @transform_0, window_bounds = array<i64: 8, 2, 128>}, {transform_indices = @transform_1, window_bounds = array<i64: 8, 2, 128>}, {transform_indices = @transform_2, window_bounds = array<i64: 8, 8, 128>}, {transform_indices = @transform_3, window_bounds = array<i64: 8, 8, 128>}, {transform_indices = @transform_4, window_bounds = array<i64: 2, 8, 128>}, {transform_indices = @transform_5, window_bounds = array<i64: 2, 8, 128>}]} {
    %cst = arith.constant 0.000000e+00 : f32
    %0 = vector.broadcast %cst : f32 to vector<2x8x128xf32>
    %cst_0 = arith.constant 0.000000e+00 : f32
    %1 = vector.broadcast %cst_0 : f32 to vector<2x8x128xf32>
    %c0_i32 = arith.constant 0 : i32
    %2 = arith.index_cast %c0_i32 : i32 to index
    %c0 = arith.constant 0 : index
    %c0_1 = arith.constant 0 : index
    %3 = vector.load %arg1[%2, %c0, %c0_1] : memref<8x2x128xf32, #tpu.memory_space<vmem>>, vector<1x2x128xf32>
    %4 = vector.shape_cast %3 : vector<1x2x128xf32> to vector<2x128xf32>
    %5 = vector.shape_cast %4 : vector<2x128xf32> to vector<2x1x128xf32>
    %6 = arith.index_cast %c0_i32 : i32 to index
    %c0_2 = arith.constant 0 : index
    %c0_3 = arith.constant 0 : index
    %7 = vector.load %arg2[%6, %c0_2, %c0_3] : memref<8x2x128xf32, #tpu.memory_space<vmem>>, vector<1x2x128xf32>
    %8 = vector.shape_cast %7 : vector<1x2x128xf32> to vector<2x128xf32>
    %9 = vector.shape_cast %8 : vector<2x128xf32> to vector<2x1x128xf32>
    %10 = arith.index_cast %c0_i32 : i32 to index
    %c0_4 = arith.constant 0 : index
    %c0_5 = arith.constant 0 : index
    %11 = vector.load %arg3[%10, %c0_4, %c0_5] : memref<8x8x128xf32, #tpu.memory_space<vmem>>, vector<1x8x128xf32>
    %12 = vector.shape_cast %11 : vector<1x8x128xf32> to vector<8x128xf32>
    %13 = vector.shape_cast %12 : vector<8x128xf32> to vector<1x8x128xf32>
    %14 = arith.index_cast %c0_i32 : i32 to index
    %c0_6 = arith.constant 0 : index
    %c0_7 = arith.constant 0 : index
    %15 = vector.load %arg4[%14, %c0_6, %c0_7] : memref<8x8x128xf32, #tpu.memory_space<vmem>>, vector<1x8x128xf32>
    %16 = vector.shape_cast %15 : vector<1x8x128xf32> to vector<8x128xf32>
    %17 = vector.shape_cast %16 : vector<8x128xf32> to vector<1x8x128xf32>
    %18 = vector.broadcast %5 : vector<2x1x128xf32> to vector<2x8x128xf32>
    %19 = vector.broadcast %13 : vector<1x8x128xf32> to vector<2x8x128xf32>
    %20 = arith.mulf %18, %19 : vector<2x8x128xf32>
    %21 = arith.addf %0, %20 : vector<2x8x128xf32>
    %22 = vector.broadcast %9 : vector<2x1x128xf32> to vector<2x8x128xf32>
    %23 = vector.broadcast %17 : vector<1x8x128xf32> to vector<2x8x128xf32>
    %24 = arith.mulf %22, %23 : vector<2x8x128xf32>
    %25 = arith.subf %21, %24 : vector<2x8x128xf32>
    %26 = vector.broadcast %5 : vector<2x1x128xf32> to vector<2x8x128xf32>
    %27 = vector.broadcast %17 : vector<1x8x128xf32> to vector<2x8x128xf32>
    %28 = arith.mulf %26, %27 : vector<2x8x128xf32>
    %29 = arith.addf %1, %28 : vector<2x8x128xf32>
    %30 = vector.broadcast %9 : vector<2x1x128xf32> to vector<2x8x128xf32>
    %31 = vector.broadcast %13 : vector<1x8x128xf32> to vector<2x8x128xf32>
    %32 = arith.mulf %30, %31 : vector<2x8x128xf32>
    %33 = arith.addf %29, %32 : vector<2x8x128xf32>
    %c1_i32 = arith.constant 1 : i32
    %34 = arith.index_cast %c1_i32 : i32 to index
    %c0_8 = arith.constant 0 : index
    %c0_9 = arith.constant 0 : index
    %35 = vector.load %arg1[%34, %c0_8, %c0_9] : memref<8x2x128xf32, #tpu.memory_space<vmem>>, vector<1x2x128xf32>
    %36 = vector.shape_cast %35 : vector<1x2x128xf32> to vector<2x128xf32>
    %37 = vector.shape_cast %36 : vector<2x128xf32> to vector<2x1x128xf32>
    %38 = arith.index_cast %c1_i32 : i32 to index
    %c0_10 = arith.constant 0 : index
    %c0_11 = arith.constant 0 : index
    %39 = vector.load %arg2[%38, %c0_10, %c0_11] : memref<8x2x128xf32, #tpu.memory_space<vmem>>, vector<1x2x128xf32>
    %40 = vector.shape_cast %39 : vector<1x2x128xf32> to vector<2x128xf32>
    %41 = vector.shape_cast %40 : vector<2x128xf32> to vector<2x1x128xf32>
    %42 = arith.index_cast %c1_i32 : i32 to index
    %c0_12 = arith.constant 0 : index
    %c0_13 = arith.constant 0 : index
    %43 = vector.load %arg3[%42, %c0_12, %c0_13] : memref<8x8x128xf32, #tpu.memory_space<vmem>>, vector<1x8x128xf32>
    %44 = vector.shape_cast %43 : vector<1x8x128xf32> to vector<8x128xf32>
    %45 = vector.shape_cast %44 : vector<8x128xf32> to vector<1x8x128xf32>
    %46 = arith.index_cast %c1_i32 : i32 to index
    %c0_14 = arith.constant 0 : index
    %c0_15 = arith.constant 0 : index
    %47 = vector.load %arg4[%46, %c0_14, %c0_15] : memref<8x8x128xf32, #tpu.memory_space<vmem>>, vector<1x8x128xf32>
    %48 = vector.shape_cast %47 : vector<1x8x128xf32> to vector<8x128xf32>
    %49 = vector.shape_cast %48 : vector<8x128xf32> to vector<1x8x128xf32>
    %50 = vector.broadcast %37 : vector<2x1x128xf32> to vector<2x8x128xf32>
    %51 = vector.broadcast %45 : vector<1x8x128xf32> to vector<2x8x128xf32>
    %52 = arith.mulf %50, %51 : vector<2x8x128xf32>
    %53 = arith.addf %25, %52 : vector<2x8x128xf32>
    %54 = vector.broadcast %41 : vector<2x1x128xf32> to vector<2x8x128xf32>
    %55 = vector.broadcast %49 : vector<1x8x128xf32> to vector<2x8x128xf32>
    %56 = arith.mulf %54, %55 : vector<2x8x128xf32>
    %57 = arith.subf %53, %56 : vector<2x8x128xf32>
    %58 = vector.broadcast %37 : vector<2x1x128xf32> to vector<2x8x128xf32>
    %59 = vector.broadcast %49 : vector<1x8x128xf32> to vector<2x8x128xf32>
    %60 = arith.mulf %58, %59 : vector<2x8x128xf32>
    %61 = arith.addf %33, %60 : vector<2x8x128xf32>
    %62 = vector.broadcast %41 : vector<2x1x128xf32> to vector<2x8x128xf32>
    %63 = vector.broadcast %45 : vector<1x8x128xf32> to vector<2x8x128xf32>
    %64 = arith.mulf %62, %63 : vector<2x8x128xf32>
    %65 = arith.addf %61, %64 : vector<2x8x128xf32>
    %c2_i32 = arith.constant 2 : i32
    %66 = arith.index_cast %c2_i32 : i32 to index
    %c0_16 = arith.constant 0 : index
    %c0_17 = arith.constant 0 : index
    %67 = vector.load %arg1[%66, %c0_16, %c0_17] : memref<8x2x128xf32, #tpu.memory_space<vmem>>, vector<1x2x128xf32>
    %68 = vector.shape_cast %67 : vector<1x2x128xf32> to vector<2x128xf32>
    %69 = vector.shape_cast %68 : vector<2x128xf32> to vector<2x1x128xf32>
    %70 = arith.index_cast %c2_i32 : i32 to index
    %c0_18 = arith.constant 0 : index
    %c0_19 = arith.constant 0 : index
    %71 = vector.load %arg2[%70, %c0_18, %c0_19] : memref<8x2x128xf32, #tpu.memory_space<vmem>>, vector<1x2x128xf32>
    %72 = vector.shape_cast %71 : vector<1x2x128xf32> to vector<2x128xf32>
    %73 = vector.shape_cast %72 : vector<2x128xf32> to vector<2x1x128xf32>
    %74 = arith.index_cast %c2_i32 : i32 to index
    %c0_20 = arith.constant 0 : index
    %c0_21 = arith.constant 0 : index
    %75 = vector.load %arg3[%74, %c0_20, %c0_21] : memref<8x8x128xf32, #tpu.memory_space<vmem>>, vector<1x8x128xf32>
    %76 = vector.shape_cast %75 : vector<1x8x128xf32> to vector<8x128xf32>
    %77 = vector.shape_cast %76 : vector<8x128xf32> to vector<1x8x128xf32>
    %78 = arith.index_cast %c2_i32 : i32 to index
    %c0_22 = arith.constant 0 : index
    %c0_23 = arith.constant 0 : index
    %79 = vector.load %arg4[%78, %c0_22, %c0_23] : memref<8x8x128xf32, #tpu.memory_space<vmem>>, vector<1x8x128xf32>
    %80 = vector.shape_cast %79 : vector<1x8x128xf32> to vector<8x128xf32>
    %81 = vector.shape_cast %80 : vector<8x128xf32> to vector<1x8x128xf32>
    %82 = vector.broadcast %69 : vector<2x1x128xf32> to vector<2x8x128xf32>
    %83 = vector.broadcast %77 : vector<1x8x128xf32> to vector<2x8x128xf32>
    %84 = arith.mulf %82, %83 : vector<2x8x128xf32>
    %85 = arith.addf %57, %84 : vector<2x8x128xf32>
    %86 = vector.broadcast %73 : vector<2x1x128xf32> to vector<2x8x128xf32>
    %87 = vector.broadcast %81 : vector<1x8x128xf32> to vector<2x8x128xf32>
    %88 = arith.mulf %86, %87 : vector<2x8x128xf32>
    %89 = arith.subf %85, %88 : vector<2x8x128xf32>
    %90 = vector.broadcast %69 : vector<2x1x128xf32> to vector<2x8x128xf32>
    %91 = vector.broadcast %81 : vector<1x8x128xf32> to vector<2x8x128xf32>
    %92 = arith.mulf %90, %91 : vector<2x8x128xf32>
    %93 = arith.addf %65, %92 : vector<2x8x128xf32>
    %94 = vector.broadcast %73 : vector<2x1x128xf32> to vector<2x8x128xf32>
    %95 = vector.broadcast %77 : vector<1x8x128xf32> to vector<2x8x128xf32>
    %96 = arith.mulf %94, %95 : vector<2x8x128xf32>
    %97 = arith.addf %93, %96 : vector<2x8x128xf32>
    %c3_i32 = arith.constant 3 : i32
    %98 = arith.index_cast %c3_i32 : i32 to index
    %c0_24 = arith.constant 0 : index
    %c0_25 = arith.constant 0 : index
    %99 = vector.load %arg1[%98, %c0_24, %c0_25] : memref<8x2x128xf32, #tpu.memory_space<vmem>>, vector<1x2x128xf32>
    %100 = vector.shape_cast %99 : vector<1x2x128xf32> to vector<2x128xf32>
    %101 = vector.shape_cast %100 : vector<2x128xf32> to vector<2x1x128xf32>
    %102 = arith.index_cast %c3_i32 : i32 to index
    %c0_26 = arith.constant 0 : index
    %c0_27 = arith.constant 0 : index
    %103 = vector.load %arg2[%102, %c0_26, %c0_27] : memref<8x2x128xf32, #tpu.memory_space<vmem>>, vector<1x2x128xf32>
    %104 = vector.shape_cast %103 : vector<1x2x128xf32> to vector<2x128xf32>
    %105 = vector.shape_cast %104 : vector<2x128xf32> to vector<2x1x128xf32>
    %106 = arith.index_cast %c3_i32 : i32 to index
    %c0_28 = arith.constant 0 : index
    %c0_29 = arith.constant 0 : index
    %107 = vector.load %arg3[%106, %c0_28, %c0_29] : memref<8x8x128xf32, #tpu.memory_space<vmem>>, vector<1x8x128xf32>
    %108 = vector.shape_cast %107 : vector<1x8x128xf32> to vector<8x128xf32>
    %109 = vector.shape_cast %108 : vector<8x128xf32> to vector<1x8x128xf32>
    %110 = arith.index_cast %c3_i32 : i32 to index
    %c0_30 = arith.constant 0 : index
    %c0_31 = arith.constant 0 : index
    %111 = vector.load %arg4[%110, %c0_30, %c0_31] : memref<8x8x128xf32, #tpu.memory_space<vmem>>, vector<1x8x128xf32>
    %112 = vector.shape_cast %111 : vector<1x8x128xf32> to vector<8x128xf32>
    %113 = vector.shape_cast %112 : vector<8x128xf32> to vector<1x8x128xf32>
    %114 = vector.broadcast %101 : vector<2x1x128xf32> to vector<2x8x128xf32>
    %115 = vector.broadcast %109 : vector<1x8x128xf32> to vector<2x8x128xf32>
    %116 = arith.mulf %114, %115 : vector<2x8x128xf32>
    %117 = arith.addf %89, %116 : vector<2x8x128xf32>
    %118 = vector.broadcast %105 : vector<2x1x128xf32> to vector<2x8x128xf32>
    %119 = vector.broadcast %113 : vector<1x8x128xf32> to vector<2x8x128xf32>
    %120 = arith.mulf %118, %119 : vector<2x8x128xf32>
    %121 = arith.subf %117, %120 : vector<2x8x128xf32>
    %122 = vector.broadcast %101 : vector<2x1x128xf32> to vector<2x8x128xf32>
    %123 = vector.broadcast %113 : vector<1x8x128xf32> to vector<2x8x128xf32>
    %124 = arith.mulf %122, %123 : vector<2x8x128xf32>
    %125 = arith.addf %97, %124 : vector<2x8x128xf32>
    %126 = vector.broadcast %105 : vector<2x1x128xf32> to vector<2x8x128xf32>
    %127 = vector.broadcast %109 : vector<1x8x128xf32> to vector<2x8x128xf32>
    %128 = arith.mulf %126, %127 : vector<2x8x128xf32>
    %129 = arith.addf %125, %128 : vector<2x8x128xf32>
    %c4_i32 = arith.constant 4 : i32
    %130 = arith.index_cast %c4_i32 : i32 to index
    %c0_32 = arith.constant 0 : index
    %c0_33 = arith.constant 0 : index
    %131 = vector.load %arg1[%130, %c0_32, %c0_33] : memref<8x2x128xf32, #tpu.memory_space<vmem>>, vector<1x2x128xf32>
    %132 = vector.shape_cast %131 : vector<1x2x128xf32> to vector<2x128xf32>
    %133 = vector.shape_cast %132 : vector<2x128xf32> to vector<2x1x128xf32>
    %134 = arith.index_cast %c4_i32 : i32 to index
    %c0_34 = arith.constant 0 : index
    %c0_35 = arith.constant 0 : index
    %135 = vector.load %arg2[%134, %c0_34, %c0_35] : memref<8x2x128xf32, #tpu.memory_space<vmem>>, vector<1x2x128xf32>
    %136 = vector.shape_cast %135 : vector<1x2x128xf32> to vector<2x128xf32>
    %137 = vector.shape_cast %136 : vector<2x128xf32> to vector<2x1x128xf32>
    %138 = arith.index_cast %c4_i32 : i32 to index
    %c0_36 = arith.constant 0 : index
    %c0_37 = arith.constant 0 : index
    %139 = vector.load %arg3[%138, %c0_36, %c0_37] : memref<8x8x128xf32, #tpu.memory_space<vmem>>, vector<1x8x128xf32>
    %140 = vector.shape_cast %139 : vector<1x8x128xf32> to vector<8x128xf32>
    %141 = vector.shape_cast %140 : vector<8x128xf32> to vector<1x8x128xf32>
    %142 = arith.index_cast %c4_i32 : i32 to index
    %c0_38 = arith.constant 0 : index
    %c0_39 = arith.constant 0 : index
    %143 = vector.load %arg4[%142, %c0_38, %c0_39] : memref<8x8x128xf32, #tpu.memory_space<vmem>>, vector<1x8x128xf32>
    %144 = vector.shape_cast %143 : vector<1x8x128xf32> to vector<8x128xf32>
    %145 = vector.shape_cast %144 : vector<8x128xf32> to vector<1x8x128xf32>
    %146 = vector.broadcast %133 : vector<2x1x128xf32> to vector<2x8x128xf32>
    %147 = vector.broadcast %141 : vector<1x8x128xf32> to vector<2x8x128xf32>
    %148 = arith.mulf %146, %147 : vector<2x8x128xf32>
    %149 = arith.addf %121, %148 : vector<2x8x128xf32>
    %150 = vector.broadcast %137 : vector<2x1x128xf32> to vector<2x8x128xf32>
    %151 = vector.broadcast %145 : vector<1x8x128xf32> to vector<2x8x128xf32>
    %152 = arith.mulf %150, %151 : vector<2x8x128xf32>
    %153 = arith.subf %149, %152 : vector<2x8x128xf32>
    %154 = vector.broadcast %133 : vector<2x1x128xf32> to vector<2x8x128xf32>
    %155 = vector.broadcast %145 : vector<1x8x128xf32> to vector<2x8x128xf32>
    %156 = arith.mulf %154, %155 : vector<2x8x128xf32>
    %157 = arith.addf %129, %156 : vector<2x8x128xf32>
    %158 = vector.broadcast %137 : vector<2x1x128xf32> to vector<2x8x128xf32>
    %159 = vector.broadcast %141 : vector<1x8x128xf32> to vector<2x8x128xf32>
    %160 = arith.mulf %158, %159 : vector<2x8x128xf32>
    %161 = arith.addf %157, %160 : vector<2x8x128xf32>
    %c5_i32 = arith.constant 5 : i32
    %162 = arith.index_cast %c5_i32 : i32 to index
    %c0_40 = arith.constant 0 : index
    %c0_41 = arith.constant 0 : index
    %163 = vector.load %arg1[%162, %c0_40, %c0_41] : memref<8x2x128xf32, #tpu.memory_space<vmem>>, vector<1x2x128xf32>
    %164 = vector.shape_cast %163 : vector<1x2x128xf32> to vector<2x128xf32>
    %165 = vector.shape_cast %164 : vector<2x128xf32> to vector<2x1x128xf32>
    %166 = arith.index_cast %c5_i32 : i32 to index
    %c0_42 = arith.constant 0 : index
    %c0_43 = arith.constant 0 : index
    %167 = vector.load %arg2[%166, %c0_42, %c0_43] : memref<8x2x128xf32, #tpu.memory_space<vmem>>, vector<1x2x128xf32>
    %168 = vector.shape_cast %167 : vector<1x2x128xf32> to vector<2x128xf32>
    %169 = vector.shape_cast %168 : vector<2x128xf32> to vector<2x1x128xf32>
    %170 = arith.index_cast %c5_i32 : i32 to index
    %c0_44 = arith.constant 0 : index
    %c0_45 = arith.constant 0 : index
    %171 = vector.load %arg3[%170, %c0_44, %c0_45] : memref<8x8x128xf32, #tpu.memory_space<vmem>>, vector<1x8x128xf32>
    %172 = vector.shape_cast %171 : vector<1x8x128xf32> to vector<8x128xf32>
    %173 = vector.shape_cast %172 : vector<8x128xf32> to vector<1x8x128xf32>
    %174 = arith.index_cast %c5_i32 : i32 to index
    %c0_46 = arith.constant 0 : index
    %c0_47 = arith.constant 0 : index
    %175 = vector.load %arg4[%174, %c0_46, %c0_47] : memref<8x8x128xf32, #tpu.memory_space<vmem>>, vector<1x8x128xf32>
    %176 = vector.shape_cast %175 : vector<1x8x128xf32> to vector<8x128xf32>
    %177 = vector.shape_cast %176 : vector<8x128xf32> to vector<1x8x128xf32>
    %178 = vector.broadcast %165 : vector<2x1x128xf32> to vector<2x8x128xf32>
    %179 = vector.broadcast %173 : vector<1x8x128xf32> to vector<2x8x128xf32>
    %180 = arith.mulf %178, %179 : vector<2x8x128xf32>
    %181 = arith.addf %153, %180 : vector<2x8x128xf32>
    %182 = vector.broadcast %169 : vector<2x1x128xf32> to vector<2x8x128xf32>
    %183 = vector.broadcast %177 : vector<1x8x128xf32> to vector<2x8x128xf32>
    %184 = arith.mulf %182, %183 : vector<2x8x128xf32>
    %185 = arith.subf %181, %184 : vector<2x8x128xf32>
    %186 = vector.broadcast %165 : vector<2x1x128xf32> to vector<2x8x128xf32>
    %187 = vector.broadcast %177 : vector<1x8x128xf32> to vector<2x8x128xf32>
    %188 = arith.mulf %186, %187 : vector<2x8x128xf32>
    %189 = arith.addf %161, %188 : vector<2x8x128xf32>
    %190 = vector.broadcast %169 : vector<2x1x128xf32> to vector<2x8x128xf32>
    %191 = vector.broadcast %173 : vector<1x8x128xf32> to vector<2x8x128xf32>
    %192 = arith.mulf %190, %191 : vector<2x8x128xf32>
    %193 = arith.addf %189, %192 : vector<2x8x128xf32>
    %c6_i32 = arith.constant 6 : i32
    %194 = arith.index_cast %c6_i32 : i32 to index
    %c0_48 = arith.constant 0 : index
    %c0_49 = arith.constant 0 : index
    %195 = vector.load %arg1[%194, %c0_48, %c0_49] : memref<8x2x128xf32, #tpu.memory_space<vmem>>, vector<1x2x128xf32>
    %196 = vector.shape_cast %195 : vector<1x2x128xf32> to vector<2x128xf32>
    %197 = vector.shape_cast %196 : vector<2x128xf32> to vector<2x1x128xf32>
    %198 = arith.index_cast %c6_i32 : i32 to index
    %c0_50 = arith.constant 0 : index
    %c0_51 = arith.constant 0 : index
    %199 = vector.load %arg2[%198, %c0_50, %c0_51] : memref<8x2x128xf32, #tpu.memory_space<vmem>>, vector<1x2x128xf32>
    %200 = vector.shape_cast %199 : vector<1x2x128xf32> to vector<2x128xf32>
    %201 = vector.shape_cast %200 : vector<2x128xf32> to vector<2x1x128xf32>
    %202 = arith.index_cast %c6_i32 : i32 to index
    %c0_52 = arith.constant 0 : index
    %c0_53 = arith.constant 0 : index
    %203 = vector.load %arg3[%202, %c0_52, %c0_53] : memref<8x8x128xf32, #tpu.memory_space<vmem>>, vector<1x8x128xf32>
    %204 = vector.shape_cast %203 : vector<1x8x128xf32> to vector<8x128xf32>
    %205 = vector.shape_cast %204 : vector<8x128xf32> to vector<1x8x128xf32>
    %206 = arith.index_cast %c6_i32 : i32 to index
    %c0_54 = arith.constant 0 : index
    %c0_55 = arith.constant 0 : index
    %207 = vector.load %arg4[%206, %c0_54, %c0_55] : memref<8x8x128xf32, #tpu.memory_space<vmem>>, vector<1x8x128xf32>
    %208 = vector.shape_cast %207 : vector<1x8x128xf32> to vector<8x128xf32>
    %209 = vector.shape_cast %208 : vector<8x128xf32> to vector<1x8x128xf32>
    %210 = vector.broadcast %197 : vector<2x1x128xf32> to vector<2x8x128xf32>
    %211 = vector.broadcast %205 : vector<1x8x128xf32> to vector<2x8x128xf32>
    %212 = arith.mulf %210, %211 : vector<2x8x128xf32>
    %213 = arith.addf %185, %212 : vector<2x8x128xf32>
    %214 = vector.broadcast %201 : vector<2x1x128xf32> to vector<2x8x128xf32>
    %215 = vector.broadcast %209 : vector<1x8x128xf32> to vector<2x8x128xf32>
    %216 = arith.mulf %214, %215 : vector<2x8x128xf32>
    %217 = arith.subf %213, %216 : vector<2x8x128xf32>
    %218 = vector.broadcast %197 : vector<2x1x128xf32> to vector<2x8x128xf32>
    %219 = vector.broadcast %209 : vector<1x8x128xf32> to vector<2x8x128xf32>
    %220 = arith.mulf %218, %219 : vector<2x8x128xf32>
    %221 = arith.addf %193, %220 : vector<2x8x128xf32>
    %222 = vector.broadcast %201 : vector<2x1x128xf32> to vector<2x8x128xf32>
    %223 = vector.broadcast %205 : vector<1x8x128xf32> to vector<2x8x128xf32>
    %224 = arith.mulf %222, %223 : vector<2x8x128xf32>
    %225 = arith.addf %221, %224 : vector<2x8x128xf32>
    %c7_i32 = arith.constant 7 : i32
    %226 = arith.index_cast %c7_i32 : i32 to index
    %c0_56 = arith.constant 0 : index
    %c0_57 = arith.constant 0 : index
    %227 = vector.load %arg1[%226, %c0_56, %c0_57] : memref<8x2x128xf32, #tpu.memory_space<vmem>>, vector<1x2x128xf32>
    %228 = vector.shape_cast %227 : vector<1x2x128xf32> to vector<2x128xf32>
    %229 = vector.shape_cast %228 : vector<2x128xf32> to vector<2x1x128xf32>
    %230 = arith.index_cast %c7_i32 : i32 to index
    %c0_58 = arith.constant 0 : index
    %c0_59 = arith.constant 0 : index
    %231 = vector.load %arg2[%230, %c0_58, %c0_59] : memref<8x2x128xf32, #tpu.memory_space<vmem>>, vector<1x2x128xf32>
    %232 = vector.shape_cast %231 : vector<1x2x128xf32> to vector<2x128xf32>
    %233 = vector.shape_cast %232 : vector<2x128xf32> to vector<2x1x128xf32>
    %234 = arith.index_cast %c7_i32 : i32 to index
    %c0_60 = arith.constant 0 : index
    %c0_61 = arith.constant 0 : index
    %235 = vector.load %arg3[%234, %c0_60, %c0_61] : memref<8x8x128xf32, #tpu.memory_space<vmem>>, vector<1x8x128xf32>
    %236 = vector.shape_cast %235 : vector<1x8x128xf32> to vector<8x128xf32>
    %237 = vector.shape_cast %236 : vector<8x128xf32> to vector<1x8x128xf32>
    %238 = arith.index_cast %c7_i32 : i32 to index
    %c0_62 = arith.constant 0 : index
    %c0_63 = arith.constant 0 : index
    %239 = vector.load %arg4[%238, %c0_62, %c0_63] : memref<8x8x128xf32, #tpu.memory_space<vmem>>, vector<1x8x128xf32>
    %240 = vector.shape_cast %239 : vector<1x8x128xf32> to vector<8x128xf32>
    %241 = vector.shape_cast %240 : vector<8x128xf32> to vector<1x8x128xf32>
    %242 = vector.broadcast %229 : vector<2x1x128xf32> to vector<2x8x128xf32>
    %243 = vector.broadcast %237 : vector<1x8x128xf32> to vector<2x8x128xf32>
    %244 = arith.mulf %242, %243 : vector<2x8x128xf32>
    %245 = arith.addf %217, %244 : vector<2x8x128xf32>
    %246 = vector.broadcast %233 : vector<2x1x128xf32> to vector<2x8x128xf32>
    %247 = vector.broadcast %241 : vector<1x8x128xf32> to vector<2x8x128xf32>
    %248 = arith.mulf %246, %247 : vector<2x8x128xf32>
    %249 = arith.subf %245, %248 : vector<2x8x128xf32>
    %250 = vector.broadcast %229 : vector<2x1x128xf32> to vector<2x8x128xf32>
    %251 = vector.broadcast %241 : vector<1x8x128xf32> to vector<2x8x128xf32>
    %252 = arith.mulf %250, %251 : vector<2x8x128xf32>
    %253 = arith.addf %225, %252 : vector<2x8x128xf32>
    %254 = vector.broadcast %233 : vector<2x1x128xf32> to vector<2x8x128xf32>
    %255 = vector.broadcast %237 : vector<1x8x128xf32> to vector<2x8x128xf32>
    %256 = arith.mulf %254, %255 : vector<2x8x128xf32>
    %257 = arith.addf %253, %256 : vector<2x8x128xf32>
    %c8_i32 = arith.constant 8 : i32
    %c0_64 = arith.constant 0 : index
    %c0_65 = arith.constant 0 : index
    %c0_66 = arith.constant 0 : index
    %258 = vector.load %arg5[%c0_64, %c0_65, %c0_66] : memref<2x8x128xf32, #tpu.memory_space<vmem>>, vector<2x8x128xf32>
    tpu.vector_store %arg5[%c0_64, %c0_65, %c0_66], %249 {strides = array<i32>} : memref<2x8x128xf32, #tpu.memory_space<vmem>>, vector<2x8x128xf32>,
    %c0_67 = arith.constant 0 : index
    %c0_68 = arith.constant 0 : index
    %c0_69 = arith.constant 0 : index
    %259 = vector.load %arg6[%c0_67, %c0_68, %c0_69] : memref<2x8x128xf32, #tpu.memory_space<vmem>>, vector<2x8x128xf32>
    tpu.vector_store %arg6[%c0_67, %c0_68, %c0_69], %257 {strides = array<i32>} : memref<2x8x128xf32, #tpu.memory_space<vmem>>, vector<2x8x128xf32>,
    return
  }
  func.func @transform_0(%arg0: i32) -> (i32, i32, i32) {
    %c0_i32 = arith.constant 0 : i32
    %c0_i32_0 = arith.constant 0 : i32
    %c0_i32_1 = arith.constant 0 : i32
    return %c0_i32, %c0_i32_0, %arg0 : i32, i32, i32
  }
  func.func @transform_1(%arg0: i32) -> (i32, i32, i32) {
    %c0_i32 = arith.constant 0 : i32
    %c0_i32_0 = arith.constant 0 : i32
    %c0_i32_1 = arith.constant 0 : i32
    return %c0_i32, %c0_i32_0, %arg0 : i32, i32, i32
  }
  func.func @transform_2(%arg0: i32) -> (i32, i32, i32) {
    %c0_i32 = arith.constant 0 : i32
    %c0_i32_0 = arith.constant 0 : i32
    %c0_i32_1 = arith.constant 0 : i32
    return %c0_i32, %c0_i32_0, %arg0 : i32, i32, i32
  }
  func.func @transform_3(%arg0: i32) -> (i32, i32, i32) {
    %c0_i32 = arith.constant 0 : i32
    %c0_i32_0 = arith.constant 0 : i32
    %c0_i32_1 = arith.constant 0 : i32
    return %c0_i32, %c0_i32_0, %arg0 : i32, i32, i32
  }
  func.func @transform_4(%arg0: i32) -> (i32, i32, i32) {
    %c0_i32 = arith.constant 0 : i32
    %c0_i32_0 = arith.constant 0 : i32
    %c0_i32_1 = arith.constant 0 : i32
    return %c0_i32, %c0_i32_0, %arg0 : i32, i32, i32
  }
  func.func @transform_5(%arg0: i32) -> (i32, i32, i32) {
    %c0_i32 = arith.constant 0 : i32
    %c0_i32_0 = arith.constant 0 : i32
    %c0_i32_1 = arith.constant 0 : i32
    return %c0_i32, %c0_i32_0, %arg0 : i32, i32, i32
  }
}

module attributes {stable_mosaic.version = 11 : i64} {
  func.func @_linear_kernel(%arg0: i32, %arg1: i32, %arg2: memref<8x8xf32, #tpu.memory_space<vmem>>, %arg3: memref<1x8x256xf32, #tpu.memory_space<vmem>>, %arg4: memref<1x8x256xf32, #tpu.memory_space<vmem>>) attributes {dimension_semantics = [#tpu.dimension_semantics<parallel>, #tpu.dimension_semantics<parallel>], iteration_bounds = array<i64: 2, 1>, scalar_prefetch = 0 : i64, scratch_operands = 0 : i64, tpu.core_type = #tpu.core_type<tc>, window_params = [{pipeline_mode = #tpu.pipeline_mode<synchronous>, transform_indices = @transform_0, window_bounds = array<i64: 8, 8>}, {transform_indices = @transform_1, window_bounds = array<i64: 1, 8, 256>}, {transform_indices = @transform_2, window_bounds = array<i64: 1, 8, 256>}]} {
    %c0 = arith.constant 0 : index
    %c0_0 = arith.constant 0 : index
    %0 = vector.load %arg2[%c0, %c0_0] : memref<8x8xf32, #tpu.memory_space<vmem>>, vector<8x8xf32>
    %c0_1 = arith.constant 0 : index
    %c0_2 = arith.constant 0 : index
    %c0_3 = arith.constant 0 : index
    %1 = vector.load %arg3[%c0_1, %c0_2, %c0_3] : memref<1x8x256xf32, #tpu.memory_space<vmem>>, vector<1x8x256xf32>
    %2 = vector.shape_cast %1 : vector<1x8x256xf32> to vector<8x256xf32>
    %cst = arith.constant dense<0.000000e+00> : vector<8x256xf32>
    %3 = tpu.matmul %0, %2, %cst {dimension_numbers = #tpu.dot_dimension_numbers<[1], [0], [0], [1], [0, 0, 1, 1], [], []>} : vector<8x8xf32>, vector<8x256xf32>, vector<8x256xf32> -> vector<8x256xf32>
    %c0_4 = arith.constant 0 : index
    %c0_5 = arith.constant 0 : index
    %c0_6 = arith.constant 0 : index
    %4 = vector.load %arg4[%c0_4, %c0_5, %c0_6] : memref<1x8x256xf32, #tpu.memory_space<vmem>>, vector<1x8x256xf32>
    %5 = vector.shape_cast %4 : vector<1x8x256xf32> to vector<8x256xf32>
    %6 = vector.shape_cast %3 : vector<8x256xf32> to vector<1x8x256xf32>
    tpu.vector_store %arg4[%c0_4, %c0_5, %c0_6], %6 {strides = array<i32>} : memref<1x8x256xf32, #tpu.memory_space<vmem>>, vector<1x8x256xf32>,
    return
  }
  func.func @transform_0(%arg0: i32, %arg1: i32) -> (i32, i32) {
    %c0_i32 = arith.constant 0 : i32
    %c0_i32_0 = arith.constant 0 : i32
    %c0_i32_1 = arith.constant 0 : i32
    return %c0_i32, %c0_i32_0 : i32, i32
  }
  func.func @transform_1(%arg0: i32, %arg1: i32) -> (i32, i32, i32) {
    %c0_i32 = arith.constant 0 : i32
    %c0_i32_0 = arith.constant 0 : i32
    return %arg0, %c0_i32, %arg1 : i32, i32, i32
  }
  func.func @transform_2(%arg0: i32, %arg1: i32) -> (i32, i32, i32) {
    %c0_i32 = arith.constant 0 : i32
    %c0_i32_0 = arith.constant 0 : i32
    return %arg0, %c0_i32, %arg1 : i32, i32, i32
  }
}

module attributes {stable_mosaic.version = 11 : i64} {
  func.func @_add_gelu_kernel(%arg0: i32, %arg1: i32, %arg2: memref<16x256xf32, #tpu.memory_space<vmem>>, %arg3: memref<16x256xf32, #tpu.memory_space<vmem>>, %arg4: memref<16x256xf32, #tpu.memory_space<vmem>>) attributes {dimension_semantics = [#tpu.dimension_semantics<parallel>, #tpu.dimension_semantics<parallel>], iteration_bounds = array<i64: 1, 1>, scalar_prefetch = 0 : i64, scratch_operands = 0 : i64, tpu.core_type = #tpu.core_type<tc>, window_params = [{transform_indices = @transform_0, window_bounds = array<i64: 16, 256>}, {transform_indices = @transform_1, window_bounds = array<i64: 16, 256>}, {transform_indices = @transform_2, window_bounds = array<i64: 16, 256>}]} {
    %c0 = arith.constant 0 : index
    %c0_0 = arith.constant 0 : index
    %0 = vector.load %arg2[%c0, %c0_0] : memref<16x256xf32, #tpu.memory_space<vmem>>, vector<16x256xf32>
    %c0_1 = arith.constant 0 : index
    %c0_2 = arith.constant 0 : index
    %1 = vector.load %arg3[%c0_1, %c0_2] : memref<16x256xf32, #tpu.memory_space<vmem>>, vector<16x256xf32>
    %2 = arith.addf %0, %1 : vector<16x256xf32>
    %cst = arith.constant 5.000000e-01 : f32
    %3 = vector.broadcast %cst : f32 to vector<16x256xf32>
    %4 = arith.mulf %3, %2 : vector<16x256xf32>
    %cst_3 = arith.constant 0.707106769 : f32
    %5 = vector.broadcast %cst_3 : f32 to vector<16x256xf32>
    %6 = arith.mulf %2, %5 : vector<16x256xf32>
    %cst_4 = arith.constant 0.000000e+00 : f32
    %7 = vector.broadcast %cst_4 : f32 to vector<16x256xf32>
    %8 = arith.cmpf oge, %6, %7 : vector<16x256xf32>
    %cst_5 = arith.constant 1.000000e+00 : f32
    %cst_6 = arith.constant -1.000000e+00 : f32
    %9 = vector.broadcast %cst_5 : f32 to vector<16x256xf32>
    %10 = vector.broadcast %cst_6 : f32 to vector<16x256xf32>
    %11 = arith.select %8, %9, %10 : vector<16x256xi1>, vector<16x256xf32>
    %12 = math.absf %6 : vector<16x256xf32>
    %cst_7 = arith.constant 0.327591091 : f32
    %13 = vector.broadcast %cst_7 : f32 to vector<16x256xf32>
    %14 = arith.mulf %13, %12 : vector<16x256xf32>
    %cst_8 = arith.constant 1.000000e+00 : f32
    %15 = vector.broadcast %cst_8 : f32 to vector<16x256xf32>
    %16 = arith.addf %15, %14 : vector<16x256xf32>
    %17 = tpu.reciprocal %16 {approx = true} : vector<16x256xf32> -> vector<16x256xf32>
    %cst_9 = arith.constant 1.06140542 : f32
    %18 = vector.broadcast %cst_9 : f32 to vector<16x256xf32>
    %19 = arith.mulf %18, %17 : vector<16x256xf32>
    %cst_10 = arith.constant -1.45315206 : f32
    %20 = vector.broadcast %cst_10 : f32 to vector<16x256xf32>
    %21 = arith.addf %19, %20 : vector<16x256xf32>
    %22 = arith.mulf %21, %17 : vector<16x256xf32>
    %cst_11 = arith.constant 1.42141378 : f32
    %23 = vector.broadcast %cst_11 : f32 to vector<16x256xf32>
    %24 = arith.addf %22, %23 : vector<16x256xf32>
    %25 = arith.mulf %24, %17 : vector<16x256xf32>
    %cst_12 = arith.constant -0.284496725 : f32
    %26 = vector.broadcast %cst_12 : f32 to vector<16x256xf32>
    %27 = arith.addf %25, %26 : vector<16x256xf32>
    %28 = arith.mulf %27, %17 : vector<16x256xf32>
    %cst_13 = arith.constant 0.254829586 : f32
    %29 = vector.broadcast %cst_13 : f32 to vector<16x256xf32>
    %30 = arith.addf %28, %29 : vector<16x256xf32>
    %31 = arith.mulf %30, %17 : vector<16x256xf32>
    %cst_14 = arith.constant 0.000000e+00 : f32
    %32 = vector.broadcast %cst_14 : f32 to vector<16x256xf32>
    %33 = arith.subf %32, %12 : vector<16x256xf32>
    %34 = arith.mulf %33, %12 : vector<16x256xf32>
    %35 = math.exp %34 : vector<16x256xf32>
    %36 = arith.mulf %31, %35 : vector<16x256xf32>
    %cst_15 = arith.constant 1.000000e+00 : f32
    %37 = vector.broadcast %cst_15 : f32 to vector<16x256xf32>
    %38 = arith.subf %37, %36 : vector<16x256xf32>
    %39 = arith.mulf %11, %38 : vector<16x256xf32>
    %cst_16 = arith.constant 1.000000e+00 : f32
    %40 = vector.broadcast %cst_16 : f32 to vector<16x256xf32>
    %41 = arith.addf %40, %39 : vector<16x256xf32>
    %42 = arith.mulf %4, %41 : vector<16x256xf32>
    %c0_17 = arith.constant 0 : index
    %c0_18 = arith.constant 0 : index
    %43 = vector.load %arg4[%c0_17, %c0_18] : memref<16x256xf32, #tpu.memory_space<vmem>>, vector<16x256xf32>
    tpu.vector_store %arg4[%c0_17, %c0_18], %42 {strides = array<i32>} : memref<16x256xf32, #tpu.memory_space<vmem>>, vector<16x256xf32>,
    return
  }
  func.func @transform_0(%arg0: i32, %arg1: i32) -> (i32, i32) {
    %c0_i32 = arith.constant 0 : i32
    return %arg0, %arg1 : i32, i32
  }
  func.func @transform_1(%arg0: i32, %arg1: i32) -> (i32, i32) {
    %c0_i32 = arith.constant 0 : i32
    return %arg0, %arg1 : i32, i32
  }
  func.func @transform_2(%arg0: i32, %arg1: i32) -> (i32, i32) {
    %c0_i32 = arith.constant 0 : i32
    return %arg0, %arg1 : i32, i32
  }
}

</mosaic_0001>

<llo_original>
// kernel: reverse.1
$region0: #{reverse.1}
  #allocation0 [shape = 's32[1]{0}', space=sflag, size = 0x4, scoped, tag = 'scoped memory for reverse.1']
  %s0 = inlined_call_operand.vmem [shape: f32[2,8,16,7], index: 0, kind: input, shape index: {}]
  %s1 = inlined_call_operand.vmem [shape: f32[2,8,16,7], index: 1, kind: output, shape index: {}]
  %s2 = scalar_lea.vmem %s0, 48
  %v3 = vld [vmem:[%s2] sm:$0xff]
  %4 = vst [vmem:[%s1] sm:$0xff] %v3
  %s5 = scalar_lea.vmem %s0, 104
  %v6 = vld [vmem:[%s5] sm:$0xff]
  %s7 = scalar_lea.vmem %s1, 56
  %8 = vst [vmem:[%s7] sm:$0xff] %v6
  %s9 = scalar_lea.vmem %s0, 40
  %v10 = vld [vmem:[%s9] sm:$0xff]
  %s11 = scalar_lea.vmem %s1, 8
  %12 = vst [vmem:[%s11] sm:$0xff] %v10
  %s13 = scalar_lea.vmem %s0, 96
  %v14 = vld [vmem:[%s13] sm:$0xff]
  %s15 = scalar_lea.vmem %s1, 64
  %16 = vst [vmem:[%s15] sm:$0xff] %v14
  %s17 = scalar_lea.vmem %s0, 32
  %v18 = vld [vmem:[%s17] sm:$0xff]
  %s19 = scalar_lea.vmem %s1, 16
  %20 = vst [vmem:[%s19] sm:$0xff] %v18
  %s21 = scalar_lea.vmem %s0, 88
  %v22 = vld [vmem:[%s21] sm:$0xff]
  %s23 = scalar_lea.vmem %s1, 72
  %24 = vst [vmem:[%s23] sm:$0xff] %v22
  %s25 = scalar_lea.vmem %s0, 24
  %v26 = vld [vmem:[%s25] sm:$0xff]
  %s27 = scalar_lea.vmem %s1, 24
  %28 = vst [vmem:[%s27] sm:$0xff] %v26
  %s29 = scalar_lea.vmem %s0, 80
  %v30 = vld [vmem:[%s29] sm:$0xff]
  %s31 = scalar_lea.vmem %s1, 80
  %32 = vst [vmem:[%s31] sm:$0xff] %v30
  %s33 = scalar_lea.vmem %s0, 16
  %v34 = vld [vmem:[%s33] sm:$0xff]
  %s35 = scalar_lea.vmem %s1, 32
  %36 = vst [vmem:[%s35] sm:$0xff] %v34
  %s37 = scalar_lea.vmem %s0, 72
  %v38 = vld [vmem:[%s37] sm:$0xff]
  %s39 = scalar_lea.vmem %s1, 88
  %40 = vst [vmem:[%s39] sm:$0xff] %v38
  %s41 = scalar_lea.vmem %s0, 8
  %v42 = vld [vmem:[%s41] sm:$0xff]
  %s43 = scalar_lea.vmem %s1, 40
  %44 = vst [vmem:[%s43] sm:$0xff] %v42
  %s45 = scalar_lea.vmem %s0, 64
  %v46 = vld [vmem:[%s45] sm:$0xff]
  %s47 = scalar_lea.vmem %s1, 96
  %48 = vst [vmem:[%s47] sm:$0xff] %v46
  %v49 = vld [vmem:[%s0] sm:$0xff]
  %s50 = scalar_lea.vmem %s1, 48
  %51 = vst [vmem:[%s50] sm:$0xff] %v49
  %s52 = scalar_lea.vmem %s0, 56
  %v53 = vld [vmem:[%s52] sm:$0xff]
  %s54 = scalar_lea.vmem %s1, 104
  %55 = vst [vmem:[%s54] sm:$0xff] %v53

// kernel: dfno_block_forward.4
$region0: #{dfno_block_forward.4}
  #allocation0 [shape = 'u32[]', space=smem, size = 0x4, offset = 0x4, fixed_abs, tag = 'smem constant byte address 0x4 - core index']
  #allocation1 [shape = 'u32[144,128]{1,0:T(1,128)}', space=vmem, size = 0x12000, scoped, tag = 'internal scratch']
  %s0 = inlined_call_operand.vmem [shape: f32[8,2,128], index: 0, kind: input, shape index: {}]
  %s1 = inlined_call_operand.vmem [shape: f32[8,2,128], index: 1, kind: input, shape index: {}]
  %s2 = inlined_call_operand.vmem [shape: f32[8,8,128], index: 2, kind: input, shape index: {}]
  %s3 = inlined_call_operand.vmem [shape: f32[8,8,128], index: 3, kind: input, shape index: {}]
  %s4 = inlined_call_operand.vmem [shape: f32[2,8,128], index: 4, kind: output, shape index: {0}]
  %s5 = inlined_call_operand.vmem [shape: f32[2,8,128], index: 5, kind: output, shape index: {1}]
  %6 = xla_tuple %s4, %s5
  %s7 = sld [smem:[#allocation0]]
  $region34: #{dfno_block_forward.4} parent=0
    _
  %s9 = ssub.s32 1, %s7
  %s10 = scalar_select 0, %s9, %s7
  // Predicated region
  $region2: #{dfno_block_forward.4} parent=0 // pred_check
    _
  $region3: #{dfno_block_forward.4} parent=0 // pred_check_branch
    %12 = sbr.rel (0) target = $region5
  $region4: #{dfno_block_forward.4} parent=0 // pred_region
    _
  $region5: #{dfno_block_forward.4} parent=0 // pred_fallthru
    _
  // Predicated region
  $region6: #{dfno_block_forward.4} parent=0 // pred_check
    _
  $region7: #{dfno_block_forward.4} parent=0 // pred_check_branch
    %14 = sbr.rel (0) target = $region9
  $region8: #{dfno_block_forward.4} parent=0 // pred_region
    _
  $region9: #{dfno_block_forward.4} parent=0 // pred_fallthru
    _
  // Predicated region
  $region10: #{dfno_block_forward.4} parent=0 // pred_check
    _
  $region11: #{dfno_block_forward.4} parent=0 // pred_check_branch
    %16 = sbr.rel (0) target = $region13
  $region12: #{dfno_block_forward.4} parent=0 // pred_region
    _
  $region13: #{dfno_block_forward.4} parent=0 // pred_fallthru
    _
  // Predicated region
  $region14: #{dfno_block_forward.4} parent=0 // pred_check
    _
  $region15: #{dfno_block_forward.4} parent=0 // pred_check_branch
    %18 = sbr.rel (0) target = $region17
  $region16: #{dfno_block_forward.4} parent=0 // pred_region
    _
  $region17: #{dfno_block_forward.4} parent=0 // pred_fallthru
    _
  %v19 = vld [vmem:[%s0] sm:$0x3]
  %v22 = vunpack.c.l.s4 1966171168
  %v23 = vunpack.c.0.s8 %v22
  %v24 = vlaneseq
  %v25 = vshrl.u32 %v24, 7
  %v26 = vsub.s32 %v23, %v25
  %v27 = vrot.slane %v19, %v26
  %v28 = vcombine.high %v27, %v27
  %v30 = vunpack.c.l.s4 1966171168
  %v31 = vunpack.c.0.s8 %v30
  %v32 = vlaneseq
  %v33 = vshrl.u32 %v32, 7
  %v34 = vsub.s32 %v31, %v33
  %v35 = vrot.slane %v27, %v34
  %v37 = vunpack.c.l.s4 1966171168
  %v38 = vunpack.c.0.s8 %v37
  %v39 = vlaneseq
  %v40 = vshrl.u32 %v39, 7
  %v41 = vsub.s32 %v38, %v40
  %v42 = vrot.slane %v28, %v41
  %v43 = vld [vmem:[%s1] sm:$0x3]
  %v46 = vunpack.c.l.s4 1966171168
  %v47 = vunpack.c.0.s8 %v46
  %v48 = vlaneseq
  %v49 = vshrl.u32 %v48, 7
  %v50 = vsub.s32 %v47, %v49
  %v51 = vrot.slane %v43, %v50
  %v52 = vcombine.high %v51, %v51
  %v54 = vunpack.c.l.s4 1966171168
  %v55 = vunpack.c.0.s8 %v54
  %v56 = vlaneseq
  %v57 = vshrl.u32 %v56, 7
  %v58 = vsub.s32 %v55, %v57
  %v59 = vrot.slane %v51, %v58
  %v61 = vunpack.c.l.s4 1966171168
  %v62 = vunpack.c.0.s8 %v61
  %v63 = vlaneseq
  %v64 = vshrl.u32 %v63, 7
  %v65 = vsub.s32 %v62, %v64
  %v66 = vrot.slane %v52, %v65
  %v67 = vld [vmem:[%s2] sm:$0xff]
  %v68 = vld [vmem:[%s3] sm:$0xff]
  %v69 = vlaneseq
  %v70 = vshrl.u32 %v69, 7
  %v71 = vsub.s32 0, %v70
  %v72 = vrot.slane %v35, %v71
  %v73 = vlaneseq
  %v74 = vshrl.u32 %v73, 7
  %v75 = vsub.s32 0, %v74
  %v76 = vrot.slane %v42, %v75
  %v79 = vmul.f32 %v72, %v67
  %v80 = vmul.f32 %v76, %v67
  %v81 = vadd.f32 %v79, 0.0
  %v82 = vadd.f32 %v80, 0.0
  %v83 = vlaneseq
  %v84 = vshrl.u32 %v83, 7
  %v85 = vsub.s32 0, %v84
  %v86 = vrot.slane %v59, %v85
  %v87 = vlaneseq
  %v88 = vshrl.u32 %v87, 7
  %v89 = vsub.s32 0, %v88
  %v90 = vrot.slane %v66, %v89
  %v93 = vmul.f32 %v86, %v68
  %v94 = vmul.f32 %v90, %v68
  %v95 = vsub.f32 %v81, %v93
  %v96 = vsub.f32 %v82, %v94
  %v97 = vmul.f32 %v72, %v68
  %v98 = vmul.f32 %v76, %v68
  %v99 = vadd.f32 %v97, 0.0
  %v100 = vadd.f32 %v98, 0.0
  %v101 = vmul.f32 %v86, %v67
  %v102 = vmul.f32 %v90, %v67
  %v103 = vadd.f32 %v99, %v101
  %v104 = vadd.f32 %v100, %v102
  %s105 = scalar_lea.vmem %s0, 2
  %v106 = vld [vmem:[%s105] sm:$0x3]
  %v109 = vunpack.c.l.s4 1966171168
  %v110 = vunpack.c.0.s8 %v109
  %v111 = vlaneseq
  %v112 = vshrl.u32 %v111, 7
  %v113 = vsub.s32 %v110, %v112
  %v114 = vrot.slane %v106, %v113
  %v115 = vcombine.high %v114, %v114
  %v117 = vunpack.c.l.s4 1966171168
  %v118 = vunpack.c.0.s8 %v117
  %v119 = vlaneseq
  %v120 = vshrl.u32 %v119, 7
  %v121 = vsub.s32 %v118, %v120
  %v122 = vrot.slane %v114, %v121
  %v124 = vunpack.c.l.s4 1966171168
  %v125 = vunpack.c.0.s8 %v124
  %v126 = vlaneseq
  %v127 = vshrl.u32 %v126, 7
  %v128 = vsub.s32 %v125, %v127
  %v129 = vrot.slane %v115, %v128
  %s130 = scalar_lea.vmem %s1, 2
  %v131 = vld [vmem:[%s130] sm:$0x3]
  %v134 = vunpack.c.l.s4 1966171168
  %v135 = vunpack.c.0.s8 %v134
  %v136 = vlaneseq
  %v137 = vshrl.u32 %v136, 7
  %v138 = vsub.s32 %v135, %v137
  %v139 = vrot.slane %v131, %v138
  %v140 = vcombine.high %v139, %v139
  %v142 = vunpack.c.l.s4 1966171168
  %v143 = vunpack.c.0.s8 %v142
  %v144 = vlaneseq
  %v145 = vshrl.u32 %v144, 7
  %v146 = vsub.s32 %v143, %v145
  %v147 = vrot.slane %v139, %v146
  %v149 = vunpack.c.l.s4 1966171168
  %v150 = vunpack.c.0.s8 %v149
  %v151 = vlaneseq
  %v152 = vshrl.u32 %v151, 7
  %v153 = vsub.s32 %v150, %v152
  %v154 = vrot.slane %v140, %v153
  %s155 = scalar_lea.vmem %s2, 8
  %v156 = vld [vmem:[%s155] sm:$0xff]
  %s157 = scalar_lea.vmem %s3, 8
  %v158 = vld [vmem:[%s157] sm:$0xff]
  %v159 = vlaneseq
  %v160 = vshrl.u32 %v159, 7
  %v161 = vsub.s32 0, %v160
  %v162 = vrot.slane %v122, %v161
  %v163 = vlaneseq
  %v164 = vshrl.u32 %v163, 7
  %v165 = vsub.s32 0, %v164
  %v166 = vrot.slane %v129, %v165
  %v169 = vmul.f32 %v162, %v156
  %v170 = vmul.f32 %v166, %v156
  %v171 = vadd.f32 %v95, %v169
  %v172 = vadd.f32 %v96, %v170
  %v173 = vlaneseq
  %v174 = vshrl.u32 %v173, 7
  %v175 = vsub.s32 0, %v174
  %v176 = vrot.slane %v147, %v175
  %v177 = vlaneseq
  %v178 = vshrl.u32 %v177, 7
  %v179 = vsub.s32 0, %v178
  %v180 = vrot.slane %v154, %v179
  %v183 = vmul.f32 %v176, %v158
  %v184 = vmul.f32 %v180, %v158
  %v185 = vsub.f32 %v171, %v183
  %v186 = vsub.f32 %v172, %v184
  %v187 = vmul.f32 %v162, %v158
  %v188 = vmul.f32 %v166, %v158
  %v189 = vadd.f32 %v103, %v187
  %v190 = vadd.f32 %v104, %v188
  %v191 = vmul.f32 %v176, %v156
  %v192 = vmul.f32 %v180, %v156
  %v193 = vadd.f32 %v189, %v191
  %v194 = vadd.f32 %v190, %v192
  %s195 = scalar_lea.vmem %s0, 4
  %v196 = vld [vmem:[%s195] sm:$0x3]
  %v199 = vunpack.c.l.s4 1966171168
  %v200 = vunpack.c.0.s8 %v199
  %v201 = vlaneseq
  %v202 = vshrl.u32 %v201, 7
  %v203 = vsub.s32 %v200, %v202
  %v204 = vrot.slane %v196, %v203
  %v205 = vcombine.high %v204, %v204
  %v207 = vunpack.c.l.s4 1966171168
  %v208 = vunpack.c.0.s8 %v207
  %v209 = vlaneseq
  %v210 = vshrl.u32 %v209, 7
  %v211 = vsub.s32 %v208, %v210
  %v212 = vrot.slane %v204, %v211
  %v214 = vunpack.c.l.s4 1966171168
  %v215 = vunpack.c.0.s8 %v214
  %v216 = vlaneseq
  %v217 = vshrl.u32 %v216, 7
  %v218 = vsub.s32 %v215, %v217
  %v219 = vrot.slane %v205, %v218
  %s220 = scalar_lea.vmem %s1, 4
  %v221 = vld [vmem:[%s220] sm:$0x3]
  %v224 = vunpack.c.l.s4 1966171168
  %v225 = vunpack.c.0.s8 %v224
  %v226 = vlaneseq
  %v227 = vshrl.u32 %v226, 7
  %v228 = vsub.s32 %v225, %v227
  %v229 = vrot.slane %v221, %v228
  %v230 = vcombine.high %v229, %v229
  %v232 = vunpack.c.l.s4 1966171168
  %v233 = vunpack.c.0.s8 %v232
  %v234 = vlaneseq
  %v235 = vshrl.u32 %v234, 7
  %v236 = vsub.s32 %v233, %v235
  %v237 = vrot.slane %v229, %v236
  %v239 = vunpack.c.l.s4 1966171168
  %v240 = vunpack.c.0.s8 %v239
  %v241 = vlaneseq
  %v242 = vshrl.u32 %v241, 7
  %v243 = vsub.s32 %v240, %v242
  %v244 = vrot.slane %v230, %v243
  %s245 = scalar_lea.vmem %s2, 16
  %v246 = vld [vmem:[%s245] sm:$0xff]
  %s247 = scalar_lea.vmem %s3, 16
  %v248 = vld [vmem:[%s247] sm:$0xff]
  %v249 = vlaneseq
  %v250 = vshrl.u32 %v249, 7
  %v251 = vsub.s32 0, %v250
  %v252 = vrot.slane %v212, %v251
  %v253 = vlaneseq
  %v254 = vshrl.u32 %v253, 7
  %v255 = vsub.s32 0, %v254
  %v256 = vrot.slane %v219, %v255
  %v259 = vmul.f32 %v252, %v246
  %v260 = vmul.f32 %v256, %v246
  %v261 = vadd.f32 %v185, %v259
  %v262 = vadd.f32 %v186, %v260
  %v263 = vlaneseq
  %v264 = vshrl.u32 %v263, 7
  %v265 = vsub.s32 0, %v264
  %v266 = vrot.slane %v237, %v265
  %v267 = vlaneseq
  %v268 = vshrl.u32 %v267, 7
  %v269 = vsub.s32 0, %v268
  %v270 = vrot.slane %v244, %v269
  %v273 = vmul.f32 %v266, %v248
  %v274 = vmul.f32 %v270, %v248
  %v275 = vsub.f32 %v261, %v273
  %v276 = vsub.f32 %v262, %v274
  %v277 = vmul.f32 %v252, %v248
  %v278 = vmul.f32 %v256, %v248
  %v279 = vadd.f32 %v193, %v277
  %v280 = vadd.f32 %v194, %v278
  %v281 = vmul.f32 %v266, %v246
  %v282 = vmul.f32 %v270, %v246
  %v283 = vadd.f32 %v279, %v281
  %v284 = vadd.f32 %v280, %v282
  %s285 = scalar_lea.vmem %s0, 6
  %v286 = vld [vmem:[%s285] sm:$0x3]
  %v289 = vunpack.c.l.s4 1966171168
  %v290 = vunpack.c.0.s8 %v289
  %v291 = vlaneseq
  %v292 = vshrl.u32 %v291, 7
  %v293 = vsub.s32 %v290, %v292
  %v294 = vrot.slane %v286, %v293
  %v295 = vcombine.high %v294, %v294
  %v297 = vunpack.c.l.s4 1966171168
  %v298 = vunpack.c.0.s8 %v297
  %v299 = vlaneseq
  %v300 = vshrl.u32 %v299, 7
  %v301 = vsub.s32 %v298, %v300
  %v302 = vrot.slane %v294, %v301
  %v304 = vunpack.c.l.s4 1966171168
  %v305 = vunpack.c.0.s8 %v304
  %v306 = vlaneseq
  %v307 = vshrl.u32 %v306, 7
  %v308 = vsub.s32 %v305, %v307
  %v309 = vrot.slane %v295, %v308
  %s310 = scalar_lea.vmem %s1, 6
  %v311 = vld [vmem:[%s310] sm:$0x3]
  %v314 = vunpack.c.l.s4 1966171168
  %v315 = vunpack.c.0.s8 %v314
  %v316 = vlaneseq
  %v317 = vshrl.u32 %v316, 7
  %v318 = vsub.s32 %v315, %v317
  %v319 = vrot.slane %v311, %v318
  %v320 = vcombine.high %v319, %v319
  %v322 = vunpack.c.l.s4 1966171168
  %v323 = vunpack.c.0.s8 %v322
  %v324 = vlaneseq
  %v325 = vshrl.u32 %v324, 7
  %v326 = vsub.s32 %v323, %v325
  %v327 = vrot.slane %v319, %v326
  %v329 = vunpack.c.l.s4 1966171168
  %v330 = vunpack.c.0.s8 %v329
  %v331 = vlaneseq
  %v332 = vshrl.u32 %v331, 7
  %v333 = vsub.s32 %v330, %v332
  %v334 = vrot.slane %v320, %v333
  %s335 = scalar_lea.vmem %s2, 24
  %v336 = vld [vmem:[%s335] sm:$0xff]
  %s337 = scalar_lea.vmem %s3, 24
  %v338 = vld [vmem:[%s337] sm:$0xff]
  %v339 = vlaneseq
  %v340 = vshrl.u32 %v339, 7
  %v341 = vsub.s32 0, %v340
  %v342 = vrot.slane %v302, %v341
  %v343 = vlaneseq
  %v344 = vshrl.u32 %v343, 7
  %v345 = vsub.s32 0, %v344
  %v346 = vrot.slane %v309, %v345
  %v349 = vmul.f32 %v342, %v336
  %v350 = vmul.f32 %v346, %v336
  %v351 = vadd.f32 %v275, %v349
  %v352 = vadd.f32 %v276, %v350
  %v353 = vlaneseq
  %v354 = vshrl.u32 %v353, 7
  %v355 = vsub.s32 0, %v354
  %v356 = vrot.slane %v327, %v355
  %v357 = vlaneseq
  %v358 = vshrl.u32 %v357, 7
  %v359 = vsub.s32 0, %v358
  %v360 = vrot.slane %v334, %v359
  %v363 = vmul.f32 %v356, %v338
  %v364 = vmul.f32 %v360, %v338
  %v365 = vsub.f32 %v351, %v363
  %v366 = vsub.f32 %v352, %v364
  %v367 = vmul.f32 %v342, %v338
  %v368 = vmul.f32 %v346, %v338
  %v369 = vadd.f32 %v283, %v367
  %v370 = vadd.f32 %v284, %v368
  %v371 = vmul.f32 %v356, %v336
  %v372 = vmul.f32 %v360, %v336
  %v373 = vadd.f32 %v369, %v371
  %v374 = vadd.f32 %v370, %v372
  %s375 = scalar_lea.vmem %s0, 8
  %v376 = vld [vmem:[%s375] sm:$0x3]
  %v379 = vunpack.c.l.s4 1966171168
  %v380 = vunpack.c.0.s8 %v379
  %v381 = vlaneseq
  %v382 = vshrl.u32 %v381, 7
  %v383 = vsub.s32 %v380, %v382
  %v384 = vrot.slane %v376, %v383
  %v385 = vcombine.high %v384, %v384
  %v387 = vunpack.c.l.s4 1966171168
  %v388 = vunpack.c.0.s8 %v387
  %v389 = vlaneseq
  %v390 = vshrl.u32 %v389, 7
  %v391 = vsub.s32 %v388, %v390
  %v392 = vrot.slane %v384, %v391
  %v394 = vunpack.c.l.s4 1966171168
  %v395 = vunpack.c.0.s8 %v394
  %v396 = vlaneseq
  %v397 = vshrl.u32 %v396, 7
  %v398 = vsub.s32 %v395, %v397
  %v399 = vrot.slane %v385, %v398
  %s400 = scalar_lea.vmem %s1, 8
  %v401 = vld [vmem:[%s400] sm:$0x3]
  %v404 = vunpack.c.l.s4 1966171168
  %v405 = vunpack.c.0.s8 %v404
  %v406 = vlaneseq
  %v407 = vshrl.u32 %v406, 7
  %v408 = vsub.s32 %v405, %v407
  %v409 = vrot.slane %v401, %v408
  %v410 = vcombine.high %v409, %v409
  %v412 = vunpack.c.l.s4 1966171168
  %v413 = vunpack.c.0.s8 %v412
  %v414 = vlaneseq
  %v415 = vshrl.u32 %v414, 7
  %v416 = vsub.s32 %v413, %v415
  %v417 = vrot.slane %v409, %v416
  %v419 = vunpack.c.l.s4 1966171168
  %v420 = vunpack.c.0.s8 %v419
  %v421 = vlaneseq
  %v422 = vshrl.u32 %v421, 7
  %v423 = vsub.s32 %v420, %v422
  %v424 = vrot.slane %v410, %v423
  %s425 = scalar_lea.vmem %s2, 32
  %v426 = vld [vmem:[%s425] sm:$0xff]
  %s427 = scalar_lea.vmem %s3, 32
  %v428 = vld [vmem:[%s427] sm:$0xff]
  %v429 = vlaneseq
  %v430 = vshrl.u32 %v429, 7
  %v431 = vsub.s32 0, %v430
  %v432 = vrot.slane %v392, %v431
  %v433 = vlaneseq
  %v434 = vshrl.u32 %v433, 7
  %v435 = vsub.s32 0, %v434
  %v436 = vrot.slane %v399, %v435
  %v439 = vmul.f32 %v432, %v426
  %v440 = vmul.f32 %v436, %v426
  %v441 = vadd.f32 %v365, %v439
  %v442 = vadd.f32 %v366, %v440
  %v443 = vlaneseq
  %v444 = vshrl.u32 %v443, 7
  %v445 = vsub.s32 0, %v444
  %v446 = vrot.slane %v417, %v445
  %v447 = vlaneseq
  %v448 = vshrl.u32 %v447, 7
  %v449 = vsub.s32 0, %v448
  %v450 = vrot.slane %v424, %v449
  %v453 = vmul.f32 %v446, %v428
  %v454 = vmul.f32 %v450, %v428
  %v455 = vsub.f32 %v441, %v453
  %v456 = vsub.f32 %v442, %v454
  %v457 = vmul.f32 %v432, %v428
  %v458 = vmul.f32 %v436, %v428
  %v459 = vadd.f32 %v373, %v457
  %v460 = vadd.f32 %v374, %v458
  %v461 = vmul.f32 %v446, %v426
  %v462 = vmul.f32 %v450, %v426
  %v463 = vadd.f32 %v459, %v461
  %v464 = vadd.f32 %v460, %v462
  %s465 = scalar_lea.vmem %s0, 10
  %v466 = vld [vmem:[%s465] sm:$0x3]
  %v469 = vunpack.c.l.s4 1966171168
  %v470 = vunpack.c.0.s8 %v469
  %v471 = vlaneseq
  %v472 = vshrl.u32 %v471, 7
  %v473 = vsub.s32 %v470, %v472
  %v474 = vrot.slane %v466, %v473
  %v475 = vcombine.high %v474, %v474
  %v477 = vunpack.c.l.s4 1966171168
  %v478 = vunpack.c.0.s8 %v477
  %v479 = vlaneseq
  %v480 = vshrl.u32 %v479, 7
  %v481 = vsub.s32 %v478, %v480
  %v482 = vrot.slane %v474, %v481
  %v484 = vunpack.c.l.s4 1966171168
  %v485 = vunpack.c.0.s8 %v484
  %v486 = vlaneseq
  %v487 = vshrl.u32 %v486, 7
  %v488 = vsub.s32 %v485, %v487
  %v489 = vrot.slane %v475, %v488
  %s490 = scalar_lea.vmem %s1, 10
  %v491 = vld [vmem:[%s490] sm:$0x3]
  %v494 = vunpack.c.l.s4 1966171168
  %v495 = vunpack.c.0.s8 %v494
  %v496 = vlaneseq
  %v497 = vshrl.u32 %v496, 7
  %v498 = vsub.s32 %v495, %v497
  %v499 = vrot.slane %v491, %v498
  %v500 = vcombine.high %v499, %v499
  %v502 = vunpack.c.l.s4 1966171168
  %v503 = vunpack.c.0.s8 %v502
  %v504 = vlaneseq
  %v505 = vshrl.u32 %v504, 7
  %v506 = vsub.s32 %v503, %v505
  %v507 = vrot.slane %v499, %v506
  %v509 = vunpack.c.l.s4 1966171168
  %v510 = vunpack.c.0.s8 %v509
  %v511 = vlaneseq
  %v512 = vshrl.u32 %v511, 7
  %v513 = vsub.s32 %v510, %v512
  %v514 = vrot.slane %v500, %v513
  %s515 = scalar_lea.vmem %s2, 40
  %v516 = vld [vmem:[%s515] sm:$0xff]
  %s517 = scalar_lea.vmem %s3, 40
  %v518 = vld [vmem:[%s517] sm:$0xff]
  %v519 = vlaneseq
  %v520 = vshrl.u32 %v519, 7
  %v521 = vsub.s32 0, %v520
  %v522 = vrot.slane %v482, %v521
  %v523 = vlaneseq
  %v524 = vshrl.u32 %v523, 7
  %v525 = vsub.s32 0, %v524
  %v526 = vrot.slane %v489, %v525
  %v529 = vmul.f32 %v522, %v516
  %v530 = vmul.f32 %v526, %v516
  %v531 = vadd.f32 %v455, %v529
  %v532 = vadd.f32 %v456, %v530
  %v533 = vlaneseq
  %v534 = vshrl.u32 %v533, 7
  %v535 = vsub.s32 0, %v534
  %v536 = vrot.slane %v507, %v535
  %v537 = vlaneseq
  %v538 = vshrl.u32 %v537, 7
  %v539 = vsub.s32 0, %v538
  %v540 = vrot.slane %v514, %v539
  %v543 = vmul.f32 %v536, %v518
  %v544 = vmul.f32 %v540, %v518
  %v545 = vsub.f32 %v531, %v543
  %v546 = vsub.f32 %v532, %v544
  %v547 = vmul.f32 %v522, %v518
  %v548 = vmul.f32 %v526, %v518
  %v549 = vadd.f32 %v463, %v547
  %v550 = vadd.f32 %v464, %v548
  %v551 = vmul.f32 %v536, %v516
  %v552 = vmul.f32 %v540, %v516
  %v553 = vadd.f32 %v549, %v551
  %v554 = vadd.f32 %v550, %v552
  %s555 = scalar_lea.vmem %s0, 12
  %v556 = vld [vmem:[%s555] sm:$0x3]
  %v559 = vunpack.c.l.s4 1966171168
  %v560 = vunpack.c.0.s8 %v559
  %v561 = vlaneseq
  %v562 = vshrl.u32 %v561, 7
  %v563 = vsub.s32 %v560, %v562
  %v564 = vrot.slane %v556, %v563
  %v565 = vcombine.high %v564, %v564
  %v567 = vunpack.c.l.s4 1966171168
  %v568 = vunpack.c.0.s8 %v567
  %v569 = vlaneseq
  %v570 = vshrl.u32 %v569, 7
  %v571 = vsub.s32 %v568, %v570
  %v572 = vrot.slane %v564, %v571
  %v574 = vunpack.c.l.s4 1966171168
  %v575 = vunpack.c.0.s8 %v574
  %v576 = vlaneseq
  %v577 = vshrl.u32 %v576, 7
  %v578 = vsub.s32 %v575, %v577
  %v579 = vrot.slane %v565, %v578
  %s580 = scalar_lea.vmem %s1, 12
  %v581 = vld [vmem:[%s580] sm:$0x3]
  %v584 = vunpack.c.l.s4 1966171168
  %v585 = vunpack.c.0.s8 %v584
  %v586 = vlaneseq
  %v587 = vshrl.u32 %v586, 7
  %v588 = vsub.s32 %v585, %v587
  %v589 = vrot.slane %v581, %v588
  %v590 = vcombine.high %v589, %v589
  %v592 = vunpack.c.l.s4 1966171168
  %v593 = vunpack.c.0.s8 %v592
  %v594 = vlaneseq
  %v595 = vshrl.u32 %v594, 7
  %v596 = vsub.s32 %v593, %v595
  %v597 = vrot.slane %v589, %v596
  %v599 = vunpack.c.l.s4 1966171168
  %v600 = vunpack.c.0.s8 %v599
  %v601 = vlaneseq
  %v602 = vshrl.u32 %v601, 7
  %v603 = vsub.s32 %v600, %v602
  %v604 = vrot.slane %v590, %v603
  %s605 = scalar_lea.vmem %s2, 48
  %v606 = vld [vmem:[%s605] sm:$0xff]
  %s607 = scalar_lea.vmem %s3, 48
  %v608 = vld [vmem:[%s607] sm:$0xff]
  %v609 = vlaneseq
  %v610 = vshrl.u32 %v609, 7
  %v611 = vsub.s32 0, %v610
  %v612 = vrot.slane %v572, %v611
  %v613 = vlaneseq
  %v614 = vshrl.u32 %v613, 7
  %v615 = vsub.s32 0, %v614
  %v616 = vrot.slane %v579, %v615
  %v619 = vmul.f32 %v612, %v606
  %v620 = vmul.f32 %v616, %v606
  %v621 = vadd.f32 %v545, %v619
  %v622 = vadd.f32 %v546, %v620
  %v623 = vlaneseq
  %v624 = vshrl.u32 %v623, 7
  %v625 = vsub.s32 0, %v624
  %v626 = vrot.slane %v597, %v625
  %v627 = vlaneseq
  %v628 = vshrl.u32 %v627, 7
  %v629 = vsub.s32 0, %v628
  %v630 = vrot.slane %v604, %v629
  %v633 = vmul.f32 %v626, %v608
  %v634 = vmul.f32 %v630, %v608
  %v635 = vsub.f32 %v621, %v633
  %v636 = vsub.f32 %v622, %v634
  %v637 = vmul.f32 %v612, %v608
  %v638 = vmul.f32 %v616, %v608
  %v639 = vadd.f32 %v553, %v637
  %v640 = vadd.f32 %v554, %v638
  %v641 = vmul.f32 %v626, %v606
  %v642 = vmul.f32 %v630, %v606
  %v643 = vadd.f32 %v639, %v641
  %v644 = vadd.f32 %v640, %v642
  %s645 = scalar_lea.vmem %s0, 14
  %v646 = vld [vmem:[%s645] sm:$0x3]
  %v649 = vunpack.c.l.s4 1966171168
  %v650 = vunpack.c.0.s8 %v649
  %v651 = vlaneseq
  %v652 = vshrl.u32 %v651, 7
  %v653 = vsub.s32 %v650, %v652
  %v654 = vrot.slane %v646, %v653
  %v655 = vcombine.high %v654, %v654
  %v657 = vunpack.c.l.s4 1966171168
  %v658 = vunpack.c.0.s8 %v657
  %v659 = vlaneseq
  %v660 = vshrl.u32 %v659, 7
  %v661 = vsub.s32 %v658, %v660
  %v662 = vrot.slane %v654, %v661
  %v664 = vunpack.c.l.s4 1966171168
  %v665 = vunpack.c.0.s8 %v664
  %v666 = vlaneseq
  %v667 = vshrl.u32 %v666, 7
  %v668 = vsub.s32 %v665, %v667
  %v669 = vrot.slane %v655, %v668
  %s670 = scalar_lea.vmem %s1, 14
  %v671 = vld [vmem:[%s670] sm:$0x3]
  %v674 = vunpack.c.l.s4 1966171168
  %v675 = vunpack.c.0.s8 %v674
  %v676 = vlaneseq
  %v677 = vshrl.u32 %v676, 7
  %v678 = vsub.s32 %v675, %v677
  %v679 = vrot.slane %v671, %v678
  %v680 = vcombine.high %v679, %v679
  %v682 = vunpack.c.l.s4 1966171168
  %v683 = vunpack.c.0.s8 %v682
  %v684 = vlaneseq
  %v685 = vshrl.u32 %v684, 7
  %v686 = vsub.s32 %v683, %v685
  %v687 = vrot.slane %v679, %v686
  %v689 = vunpack.c.l.s4 1966171168
  %v690 = vunpack.c.0.s8 %v689
  %v691 = vlaneseq
  %v692 = vshrl.u32 %v691, 7
  %v693 = vsub.s32 %v690, %v692
  %v694 = vrot.slane %v680, %v693
  %s695 = scalar_lea.vmem %s2, 56
  %v696 = vld [vmem:[%s695] sm:$0xff]
  %s697 = scalar_lea.vmem %s3, 56
  %v698 = vld [vmem:[%s697] sm:$0xff]
  %v699 = vlaneseq
  %v700 = vshrl.u32 %v699, 7
  %v701 = vsub.s32 0, %v700
  %v702 = vrot.slane %v662, %v701
  %v703 = vlaneseq
  %v704 = vshrl.u32 %v703, 7
  %v705 = vsub.s32 0, %v704
  %v706 = vrot.slane %v669, %v705
  %v709 = vmul.f32 %v702, %v696
  %v710 = vmul.f32 %v706, %v696
  %v711 = vadd.f32 %v635, %v709
  %v712 = vadd.f32 %v636, %v710
  %v713 = vlaneseq
  %v714 = vshrl.u32 %v713, 7
  %v715 = vsub.s32 0, %v714
  %v716 = vrot.slane %v687, %v715
  %v717 = vlaneseq
  %v718 = vshrl.u32 %v717, 7
  %v719 = vsub.s32 0, %v718
  %v720 = vrot.slane %v694, %v719
  %v723 = vmul.f32 %v716, %v698
  %v724 = vmul.f32 %v720, %v698
  %v725 = vsub.f32 %v711, %v723
  %v726 = vsub.f32 %v712, %v724
  %v727 = vmul.f32 %v702, %v698
  %v728 = vmul.f32 %v706, %v698
  %v729 = vadd.f32 %v643, %v727
  %v730 = vadd.f32 %v644, %v728
  %v731 = vmul.f32 %v716, %v696
  %v732 = vmul.f32 %v720, %v696
  %v733 = vadd.f32 %v729, %v731
  %v734 = vadd.f32 %v730, %v732
  %735 = vst [vmem:[%s4] sm:$0xff] %v725
  %736 = vst [vmem:[%s4 + $0x8] sm:$0xff] %v726
  %737 = vst [vmem:[%s5] sm:$0xff] %v733
  %738 = vst [vmem:[%s5 + $0x8] sm:$0xff] %v734
  // Predicated region
  $region18: #{dfno_block_forward.4} parent=0 // pred_check
    _
  $region19: #{dfno_block_forward.4} parent=0 // pred_check_branch
    %740 = sbr.rel (0) target = $region21
  $region20: #{dfno_block_forward.4} parent=0 // pred_region
    _
  $region21: #{dfno_block_forward.4} parent=0 // pred_fallthru
    _
  // Predicated region
  $region22: #{dfno_block_forward.4} parent=0 // pred_check
    _
  $region23: #{dfno_block_forward.4} parent=0 // pred_check_branch
    %742 = sbr.rel (0) target = $region25
  $region24: #{dfno_block_forward.4} parent=0 // pred_region
    _
  $region25: #{dfno_block_forward.4} parent=0 // pred_fallthru
    _
  // Predicated region
  $region26: #{dfno_block_forward.4} parent=0 // pred_check
    _
  $region27: #{dfno_block_forward.4} parent=0 // pred_check_branch
    %744 = sbr.rel (0) target = $region29
  $region28: #{dfno_block_forward.4} parent=0 // pred_region
    _
  $region29: #{dfno_block_forward.4} parent=0 // pred_fallthru
    _
  // Predicated region
  $region30: #{dfno_block_forward.4} parent=0 // pred_check
    _
  $region31: #{dfno_block_forward.4} parent=0 // pred_check_branch
    %746 = sbr.rel (0) target = $region33
  $region32: #{dfno_block_forward.4} parent=0 // pred_region
    _
  $region33: #{dfno_block_forward.4} parent=0 // pred_fallthru
    _

// kernel: dfno_block_forward.3
$region0: #{dfno_block_forward.3}
  #allocation0 [shape = 'u32[]', space=smem, size = 0x4, offset = 0x4, fixed_abs, tag = 'smem constant byte address 0x4 - core index']
  #allocation1 [shape = 'u32[144,128]{1,0:T(1,128)}', space=vmem, size = 0x12000, scoped, tag = 'internal scratch']
  %s0 = inlined_call_operand.vmem [shape: f32[8,8], index: 0, kind: input, shape index: {}]
  %s1 = inlined_call_operand.vmem [shape: f32[2,8,256], index: 1, kind: input, shape index: {}]
  %s2 = inlined_call_operand.vmem [shape: f32[2,8,256], index: 2, kind: output, shape index: {}]
  %s3 = sld [smem:[#allocation0]]
  $region41: #{dfno_block_forward.3} parent=0
    _
  %s5 = ssub.s32 1, %s3
  %s6 = scalar_select 0, %s5, %s3
  loop: start=0, step=1, limit=4
  $region2: #{dfno_block_forward.3} parent=0 // loop_pre_header
    _
  $region3: #{dfno_block_forward.3} parent=0 // loop_header
    %s8 = sphi 0, %s12
    %p9 = scmp.ge.s32.totalorder %s8, 4
    %s15 = sphi 0, %s27
    %s16 = sphi 0, %s23
    %s17 = sphi 0, %s15
    %s18 = sphi 0, %s16
    %s19 = sphi 0, %s17
    %s20 = sphi 0, %s18
    %s28 = sphi 0, %s28
    %s30 = sphi 0, %s28
    %s31 = sphi 0, %s30
    %s45 = sphi 0, %s31
    %s53 = sphi 0, %s55
    %s56 = sphi 0, %s53
    %s57 = sphi 0, %s56
    %s73 = sphi 0, %s57
    %s81 = sphi 0, %s83
    %s84 = sphi 0, %s81
    %s85 = sphi 0, %s84
    %s101 = sphi 0, %s85
  $region4: #{dfno_block_forward.3} parent=0 // loop_header_branch
    %11 = sbr.rel (%p9) target = $region8
  $region5: #{dfno_block_forward.3} parent=0 // loop_body
    %s13 = ssub.s32 %s8, 1
    %s14 = ssub.s32 %s8, 2
    %s21 = sadd.s32 1, %s16
    %p22 = scmp.ge.s32.totalorder %s21, 1
    %s23 = scalar_select %p22, 0, %s21
    %s24 = sadd.s32 1, %s15
    %s25 = scalar_select %p22, %s24, %s15
    %p26 = scmp.ge.s32.totalorder %s25, 2
    %s27 = scalar_select %p26, 0, %s25
    %s29 = sadd.s32 %s28, 1
    %p32 = scmp.eq.s32.totalorder %s8, 1
    %p33 = scmp.ne.s32.totalorder %s28, %s30
    %p34 = scmp.eq.s32.totalorder %s8, 0
    %p35 = por %p33, %p34
    %p36 = scmp.ne.s32.totalorder %s28, %s30
    %p37 = scmp.eq.s32.totalorder %s13, 1
    %p38 = por %p36, %p37
    %p39 = scmp.ne.s32.totalorder %s30, %s31
    %p40 = scmp.eq.s32.totalorder %s13, 0
    %p41 = por %p39, %p40
    %p42 = scmp.ne.s32.totalorder %s30, %s31
    %p43 = scmp.eq.s32.totalorder %s14, 1
    %p44 = por %p42, %p43
    %p46 = scmp.ne.s32.totalorder %s31, %s45
    %p47 = scmp.eq.s32.totalorder %s14, 0
    %p48 = por %p46, %p47
    %s49 = ssub.s32 %s15, %s27
    %s50 = ssub.s32 %s16, %s23
    %s51 = sor.u32 %s49, %s50
    %p52 = scmp.eq.s32.totalorder %s51, 0
    %s54 = sadd.s32 %s53, 1
    %s55 = scalar_select %p52, %s53, %s54
    %p58 = pneg %p52
    %p59 = scmp.eq.s32.totalorder %s8, 1
    %p60 = por %p58, %p59
    %p61 = scmp.ne.s32.totalorder %s53, %s56
    %p62 = scmp.eq.s32.totalorder %s8, 0
    %p63 = por %p61, %p62
    %p64 = scmp.ne.s32.totalorder %s53, %s56
    %p65 = scmp.eq.s32.totalorder %s13, 1
    %p66 = por %p64, %p65
    %p67 = scmp.ne.s32.totalorder %s56, %s57
    %p68 = scmp.eq.s32.totalorder %s13, 0
    %p69 = por %p67, %p68
    %p70 = scmp.ne.s32.totalorder %s56, %s57
    %p71 = scmp.eq.s32.totalorder %s14, 1
    %p72 = por %p70, %p71
    %p74 = scmp.ne.s32.totalorder %s57, %s73
    %p75 = scmp.eq.s32.totalorder %s14, 0
    %p76 = por %p74, %p75
    %s77 = ssub.s32 %s15, %s27
    %s78 = ssub.s32 %s16, %s23
    %s79 = sor.u32 %s77, %s78
    %p80 = scmp.eq.s32.totalorder %s79, 0
    %s82 = sadd.s32 %s81, 1
    %s83 = scalar_select %p80, %s81, %s82
    %p86 = pneg %p80
    %p87 = scmp.eq.s32.totalorder %s8, 1
    %p88 = por %p86, %p87
    %p89 = scmp.ne.s32.totalorder %s81, %s84
    %p90 = scmp.eq.s32.totalorder %s8, 0
    %p91 = por %p89, %p90
    %p92 = scmp.ne.s32.totalorder %s81, %s84
    %p93 = scmp.eq.s32.totalorder %s13, 1
    %p94 = por %p92, %p93
    %p95 = scmp.ne.s32.totalorder %s84, %s85
    %p96 = scmp.eq.s32.totalorder %s13, 0
    %p97 = por %p95, %p96
    %p98 = scmp.ne.s32.totalorder %s84, %s85
    %p99 = scmp.eq.s32.totalorder %s14, 1
    %p100 = por %p98, %p99
    %p102 = scmp.ne.s32.totalorder %s85, %s101
    %p103 = scmp.eq.s32.totalorder %s14, 0
    %p104 = por %p102, %p103
    %p105 = scmp.le.s32.totalorder 1, %s8
    %p106 = scmp.lt.s32.totalorder %s8, 3
    %p107 = pnand %p105, %p106
    %p108 = pneg %p107
    // Predicated region
    $region9: #{dfno_block_forward.3} parent=5 // pred_check
      _
    $region10: #{dfno_block_forward.3} parent=5 // pred_check_branch
      %110 = sbr.rel (%p107) target = $region12
    $region11: #{dfno_block_forward.3} parent=5 // pred_region
      %s111 = ssub.s32 %s8, 1
      // Predicated region
      $region13: #{dfno_block_forward.3} parent=11 // pred_check
        %p112 = pneg %p41
      $region14: #{dfno_block_forward.3} parent=11 // pred_check_branch
        %114 = sbr.rel (%p112) target = $region16
      $region15: #{dfno_block_forward.3} parent=11 // pred_region
        _
      $region16: #{dfno_block_forward.3} parent=11 // pred_fallthru
        _
    $region12: #{dfno_block_forward.3} parent=5 // pred_fallthru
      _
    %p115 = scmp.lt.s32.totalorder %s8, 2
    // Predicated region
    $region17: #{dfno_block_forward.3} parent=5 // pred_check
      %p116 = pneg %p115
    $region18: #{dfno_block_forward.3} parent=5 // pred_check_branch
      %118 = sbr.rel (%p116) target = $region20
    $region19: #{dfno_block_forward.3} parent=5 // pred_region
      // Predicated region
      $region21: #{dfno_block_forward.3} parent=19 // pred_check
        %p119 = pneg %p63
      $region22: #{dfno_block_forward.3} parent=19 // pred_check_branch
        %121 = sbr.rel (%p119) target = $region24
      $region23: #{dfno_block_forward.3} parent=19 // pred_region
        %s122 = smul.u32 2, %s16
        %p123 = scmp.lt.s32.totalorder %s15, 1
        %s124 = scalar_select %p123, %s15, 1
        %p125 = scmp.lt.s32.totalorder %s122, 1
        %s126 = scalar_select %p125, %s122, 1
        %s127 = smul.addr %s124, 2
        %s128 = sadd.s32 %s126, %s127
        %s129 = smul.addr %s128, 8
        %s130 = scalar_lea.vmem %s1, %s129
        %s131 = smul.u32 2, %s16
      $region24: #{dfno_block_forward.3} parent=19 // pred_fallthru
        _
    $region20: #{dfno_block_forward.3} parent=5 // pred_fallthru
      _
    %p132 = scmp.le.s32.totalorder 1, %s8
    %p133 = scmp.lt.s32.totalorder %s8, 3
    %p134 = pnand %p132, %p133
    %p135 = pneg %p134
    // Predicated region
    $region25: #{dfno_block_forward.3} parent=5 // pred_check
      _
    $region26: #{dfno_block_forward.3} parent=5 // pred_check_branch
      %137 = sbr.rel (%p134) target = $region28
    $region27: #{dfno_block_forward.3} parent=5 // pred_region
      %s138 = ssub.s32 %s8, 1
      %p139 = pneg %p41
      %p140 = pneg %p38
      %s141 = smul.u32 2, %s18
      %p142 = scmp.lt.s32.totalorder %s17, 1
      %s143 = scalar_select %p142, %s17, 1
      %p144 = scmp.lt.s32.totalorder %s141, 1
      %s145 = scalar_select %p144, %s141, 1
      %s146 = smul.addr %s143, 2
      %s147 = sadd.s32 %s145, %s146
      %s148 = smul.addr %s147, 8
      %s149 = scalar_lea.vmem %s1, %s148
      %p150 = pneg %p69
      %p151 = pneg %p66
      %p152 = pneg %p97
      %p153 = pneg %p94
      %s154 = smul.u32 2, %s18
      %p155 = scmp.lt.s32.totalorder %s17, 1
      %s156 = scalar_select %p155, %s17, 1
      %p157 = scmp.lt.s32.totalorder %s154, 1
      %s158 = scalar_select %p157, %s154, 1
      %s159 = smul.addr %s156, 2
      %s160 = sadd.s32 %s158, %s159
      %s161 = smul.addr %s160, 8
      %s162 = scalar_lea.vmem %s2, %s161
      %s163 = smul.u32 2, %s18
      %p164 = scmp.lt.s32.totalorder %s17, 1
      %s165 = scalar_select %p164, %s17, 1
      %p166 = scmp.lt.s32.totalorder %s163, 1
      %s167 = scalar_select %p166, %s163, 1
      %s168 = smul.addr %s165, 2
      %s169 = sadd.s32 %s167, %s168
      %s170 = smul.addr %s169, 8
      %s171 = scalar_lea.vmem %s1, %s170
      %s172 = smul.u32 2, %s18
      %s173 = smul.u32 2, %s18
      %p174 = scmp.lt.s32.totalorder %s17, 1
      %s175 = scalar_select %p174, %s17, 1
      %p176 = scmp.lt.s32.totalorder %s173, 1
      %s177 = scalar_select %p176, %s173, 1
      %s178 = smul.addr %s175, 2
      %s179 = sadd.s32 %s177, %s178
      %s180 = smul.addr %s179, 8
      %s181 = scalar_lea.vmem %s2, %s180
      %s182 = smul.u32 2, %s18
      %v183 = vld [vmem:[%s0] sm:$0xff]
      %v184 = vld [vmem:[%s171] sm:$0xff]
      %v185 = vld [vmem:[%s171 + $0x8] sm:$0xff]
      %vm186 = vcmask 64512
      %v188 = vsel %vm186, %v183, 0
      %190 = vmatprep.subr.mxu0 %v185
      %191 = vmatpush1.msra.mxu0 %v184
      %192 = vmatprep.subr.mxu0 0.0
      %193 = vmatpush1.msra.mxu0 0.0
      %194 = vmatprep.subr.mxu0 0.0
      %195 = vmatpush1.msra.mxu0 0.0
      %196 = vmatprep.subr.mxu0 0.0
      %197 = vmatpush1.msra.mxu0 0.0
      %198 = vmatprep.subr.mxu0 0.0
      %199 = vmatpush1.msra.mxu0 0.0
      %200 = vmatprep.subr.mxu0 0.0
      %201 = vmatpush1.msra.mxu0 0.0
      %202 = vmatprep.subr.mxu0 0.0
      %203 = vmatpush1.msra.mxu0 0.0
      %204 = vmatprep.subr.mxu0 0.0
      %205 = vmatpush1.msra.mxu0 0.0
      %206 = vmatprep.subr.mxu0 0.0
      %207 = vmatpush1.msra.mxu0 0.0
      %208 = vmatprep.subr.mxu0 0.0
      %209 = vmatpush1.msra.mxu0 0.0
      %210 = vmatprep.subr.mxu0 0.0
      %211 = vmatpush1.msra.mxu0 0.0
      %212 = vmatprep.subr.mxu0 0.0
      %213 = vmatpush1.msra.mxu0 0.0
      %214 = vmatprep.subr.mxu0 0.0
      %215 = vmatpush1.msra.mxu0 0.0
      %216 = vmatprep.subr.mxu0 0.0
      %217 = vmatpush1.msra.mxu0 0.0
      %218 = vmatprep.subr.mxu0 0.0
      %219 = vmatpush1.msra.mxu0 0.0
      %220 = vmatprep.subr.mxu0 0.0
      %221 = vmatpush1.msra.mxu0 0.0
      %222 = vmatprep.subr.mxu0 0.0
      %223 = vmatpush1.msra.mxu0 0.0
      %224 = vmatprep.subr.mxu0 0.0
      %225 = vmatpush1.msra.mxu0 0.0
      %226 = vmatprep.subr.mxu0 0.0
      %227 = vmatpush1.msra.mxu0 0.0
      %228 = vmatprep.subr.mxu0 0.0
      %229 = vmatpush1.msra.mxu0 0.0
      %230 = vmatprep.subr.mxu0 0.0
      %231 = vmatpush1.msra.mxu0 0.0
      %232 = vmatprep.subr.mxu0 0.0
      %233 = vmatpush1.msra.mxu0 0.0
      %234 = vmatprep.subr.mxu0 0.0
      %235 = vmatpush1.msra.mxu0 0.0
      %236 = vmatprep.subr.mxu0 0.0
      %237 = vmatpush1.msra.mxu0 0.0
      %238 = vmatprep.subr.mxu0 0.0
      %239 = vmatpush1.msra.mxu0 0.0
      %240 = vmatprep.subr.mxu0 0.0
      %241 = vmatpush1.msra.mxu0 0.0
      %242 = vmatprep.subr.mxu0 0.0
      %243 = vmatpush1.msra.mxu0 0.0
      %244 = vmatprep.subr.mxu0 0.0
      %245 = vmatpush1.msra.mxu0 0.0
      %246 = vmatprep.subr.mxu0 0.0
      %247 = vmatpush1.msra.mxu0 0.0
      %248 = vmatprep.subr.mxu0 0.0
      %249 = vmatpush1.msra.mxu0 0.0
      %250 = vmatprep.subr.mxu0 0.0
      %251 = vmatpush1.msra.mxu0 0.0
      %252 = vmatprep.subr.mxu0 0.0
      %253 = vmatpush1.msra.mxu0 0.0
      %254 = vmatprep.mubr.f32.mxu0 0.0
      %255 = vmatmul.mubr.f32.gmra.mrb[0].mxu0 %v188
      %v256 = vpop.f32.mrb[0].mxu0
      %v257 = vadd.f32 0.0, %v256
      %v258 = vpop.f32.mrb[0].mxu0
      %v259 = vadd.f32 0.0, %v258
      %260 = vdwg.mxu0
      %261 = vst [vmem:[%s181] sm:$0xff] %v257
      %262 = vst [vmem:[%s181 + $0x8] sm:$0xff] %v259
      %s263 = smul.u32 2, %s18
      %p264 = scmp.lt.s32.totalorder %s17, 1
      %s265 = scalar_select %p264, %s17, 1
      %p266 = scmp.lt.s32.totalorder %s263, 1
      %s267 = scalar_select %p266, %s263, 1
      %s268 = smul.addr %s265, 2
      %s269 = sadd.s32 %s267, %s268
      %s270 = smul.addr %s269, 8
      %s271 = scalar_lea.vmem %s2, %s270
      // Predicated region
      $region29: #{dfno_block_forward.3} parent=27 // pred_check
        %p272 = pneg %p94
      $region30: #{dfno_block_forward.3} parent=27 // pred_check_branch
        %274 = sbr.rel (%p272) target = $region32
      $region31: #{dfno_block_forward.3} parent=27 // pred_region
        %s275 = smul.u32 2, %s18
      $region32: #{dfno_block_forward.3} parent=27 // pred_fallthru
        _
    $region28: #{dfno_block_forward.3} parent=5 // pred_fallthru
      _
    %p276 = scmp.le.s32.totalorder 2, %s8
    // Predicated region
    $region33: #{dfno_block_forward.3} parent=5 // pred_check
      %p277 = pneg %p276
    $region34: #{dfno_block_forward.3} parent=5 // pred_check_branch
      %279 = sbr.rel (%p277) target = $region36
    $region35: #{dfno_block_forward.3} parent=5 // pred_region
      %s280 = ssub.s32 %s8, 2
      // Predicated region
      $region37: #{dfno_block_forward.3} parent=35 // pred_check
        %p281 = pneg %p100
      $region38: #{dfno_block_forward.3} parent=35 // pred_check_branch
        %283 = sbr.rel (%p281) target = $region40
      $region39: #{dfno_block_forward.3} parent=35 // pred_region
        %s284 = smul.u32 2, %s20
        %p285 = scmp.lt.s32.totalorder %s19, 1
        %s286 = scalar_select %p285, %s19, 1
        %p287 = scmp.lt.s32.totalorder %s284, 1
        %s288 = scalar_select %p287, %s284, 1
        %s289 = smul.addr %s286, 2
        %s290 = sadd.s32 %s288, %s289
        %s291 = smul.addr %s290, 8
        %s292 = scalar_lea.vmem %s2, %s291
      $region40: #{dfno_block_forward.3} parent=35 // pred_fallthru
        _
    $region36: #{dfno_block_forward.3} parent=5 // pred_fallthru
      _
  $region6: #{dfno_block_forward.3} parent=0 // loop_footer
    %s12 = sadd.s32 1, %s8
  $region7: #{dfno_block_forward.3} parent=0 // loop_footer_branch
    %7 = sbr.rel target = $region3
  $region8: #{dfno_block_forward.3} parent=0 // loop_exit
    _

// kernel: dfno_block_forward.5
$region0: #{dfno_block_forward.5}
  #allocation0 [shape = 'u32[]', space=smem, size = 0x4, offset = 0x4, fixed_abs, tag = 'smem constant byte address 0x4 - core index']
  #allocation1 [shape = 'u32[144,128]{1,0:T(1,128)}', space=vmem, size = 0x12000, scoped, tag = 'internal scratch']
  %s0 = inlined_call_operand.vmem [shape: f32[16,256], index: 0, kind: input, shape index: {}]
  %s1 = inlined_call_operand.vmem [shape: f32[16,256], index: 1, kind: input, shape index: {}]
  %s2 = inlined_call_operand.vmem [shape: f32[16,256], index: 2, kind: output, shape index: {}]
  %s3 = sld [smem:[#allocation0]]
  $region18: #{dfno_block_forward.5} parent=0
    _
  %s5 = ssub.s32 1, %s3
  %s6 = scalar_select 0, %s5, %s3
  // Predicated region
  $region2: #{dfno_block_forward.5} parent=0 // pred_check
    _
  $region3: #{dfno_block_forward.5} parent=0 // pred_check_branch
    %8 = sbr.rel (0) target = $region5
  $region4: #{dfno_block_forward.5} parent=0 // pred_region
    _
  $region5: #{dfno_block_forward.5} parent=0 // pred_fallthru
    _
  // Predicated region
  $region6: #{dfno_block_forward.5} parent=0 // pred_check
    _
  $region7: #{dfno_block_forward.5} parent=0 // pred_check_branch
    %10 = sbr.rel (0) target = $region9
  $region8: #{dfno_block_forward.5} parent=0 // pred_region
    _
  $region9: #{dfno_block_forward.5} parent=0 // pred_fallthru
    _
  %v11 = vld [vmem:[%s0] sm:$0xff]
  %v12 = vld [vmem:[%s0 + $0x8] sm:$0xff]
  %v13 = vld [vmem:[%s0 + $0x10] sm:$0xff]
  %v14 = vld [vmem:[%s0 + $0x18] sm:$0xff]
  %v15 = vld [vmem:[%s1] sm:$0xff]
  %v16 = vld [vmem:[%s1 + $0x8] sm:$0xff]
  %v17 = vld [vmem:[%s1 + $0x10] sm:$0xff]
  %v18 = vld [vmem:[%s1 + $0x18] sm:$0xff]
  %v19 = vadd.f32 %v11, %v15
  %v20 = vadd.f32 %v12, %v16
  %v21 = vadd.f32 %v13, %v17
  %v22 = vadd.f32 %v14, %v18
  %v23 = vmul.f32 %v19, 0.5
  %v24 = vmul.f32 %v20, 0.5
  %v25 = vmul.f32 %v21, 0.5
  %v26 = vmul.f32 %v22, 0.5
  %v27 = vmul.f32 %v19, 0.70710677
  %v28 = vmul.f32 %v20, 0.70710677
  %v29 = vmul.f32 %v21, 0.70710677
  %v30 = vmul.f32 %v22, 0.70710677
  %vm31 = vcmp.ge.f32.partialorder %v27, 0.0
  %vm32 = vcmp.ge.f32.partialorder %v28, 0.0
  %vm33 = vcmp.ge.f32.partialorder %v29, 0.0
  %vm34 = vcmp.ge.f32.partialorder %v30, 0.0
  %v35 = vsel %vm31, 1.0, -1.0
  %v36 = vsel %vm32, 1.0, -1.0
  %v37 = vsel %vm33, 1.0, -1.0
  %v38 = vsel %vm34, 1.0, -1.0
  %v39 = vand.u32 2147483647, %v27
  %v40 = vand.u32 2147483647, %v28
  %v41 = vand.u32 2147483647, %v29
  %v42 = vand.u32 2147483647, %v30
  %v43 = vmul.f32 %v39, 0.3275911
  %v44 = vmul.f32 %v40, 0.3275911
  %v45 = vmul.f32 %v41, 0.3275911
  %v46 = vmul.f32 %v42, 0.3275911
  %v47 = vadd.f32 %v43, 1.0
  %v48 = vadd.f32 %v44, 1.0
  %v49 = vadd.f32 %v45, 1.0
  %v50 = vadd.f32 %v46, 1.0
  %v51 = vrcp.pop %v47
  %v52 = vrcp.pop %v48
  %v53 = vrcp.pop %v49
  %v54 = vrcp.pop %v50
  %v55 = vmul.f32 %v51, 1.0614054
  %v56 = vmul.f32 %v52, 1.0614054
  %v57 = vmul.f32 %v53, 1.0614054
  %v58 = vmul.f32 %v54, 1.0614054
  %v59 = vadd.f32 %v55, -1.4531521
  %v60 = vadd.f32 %v56, -1.4531521
  %v61 = vadd.f32 %v57, -1.4531521
  %v62 = vadd.f32 %v58, -1.4531521
  %v63 = vmul.f32 %v59, %v51
  %v64 = vmul.f32 %v60, %v52
  %v65 = vmul.f32 %v61, %v53
  %v66 = vmul.f32 %v62, %v54
  %v67 = vadd.f32 %v63, 1.4214138
  %v68 = vadd.f32 %v64, 1.4214138
  %v69 = vadd.f32 %v65, 1.4214138
  %v70 = vadd.f32 %v66, 1.4214138
  %v71 = vmul.f32 %v67, %v51
  %v72 = vmul.f32 %v68, %v52
  %v73 = vmul.f32 %v69, %v53
  %v74 = vmul.f32 %v70, %v54
  %v75 = vadd.f32 %v71, -0.28449672
  %v76 = vadd.f32 %v72, -0.28449672
  %v77 = vadd.f32 %v73, -0.28449672
  %v78 = vadd.f32 %v74, -0.28449672
  %v79 = vmul.f32 %v75, %v51
  %v80 = vmul.f32 %v76, %v52
  %v81 = vmul.f32 %v77, %v53
  %v82 = vmul.f32 %v78, %v54
  %v83 = vadd.f32 %v79, 0.2548296
  %v84 = vadd.f32 %v80, 0.2548296
  %v85 = vadd.f32 %v81, 0.2548296
  %v86 = vadd.f32 %v82, 0.2548296
  %v87 = vmul.f32 %v83, %v51
  %v88 = vmul.f32 %v84, %v52
  %v89 = vmul.f32 %v85, %v53
  %v90 = vmul.f32 %v86, %v54
  %v91 = vsub.f32 0.0, %v39
  %v92 = vsub.f32 0.0, %v40
  %v93 = vsub.f32 0.0, %v41
  %v94 = vsub.f32 0.0, %v42
  %v95 = vmul.f32 %v91, %v39
  %v96 = vmul.f32 %v92, %v40
  %v97 = vmul.f32 %v93, %v41
  %v98 = vmul.f32 %v94, %v42
  %v99 = vmul.f32 %v95, 1.442695
  %v100 = vpow.pop %v99
  %v101 = vmul.f32 %v96, 1.442695
  %v102 = vpow.pop %v101
  %v103 = vmul.f32 %v97, 1.442695
  %v104 = vpow.pop %v103
  %v105 = vmul.f32 %v98, 1.442695
  %v106 = vpow.pop %v105
  %v107 = vmul.f32 %v87, %v100
  %v108 = vmul.f32 %v88, %v102
  %v109 = vmul.f32 %v89, %v104
  %v110 = vmul.f32 %v90, %v106
  %v111 = vsub.f32 1.0, %v107
  %v112 = vsub.f32 1.0, %v108
  %v113 = vsub.f32 1.0, %v109
  %v114 = vsub.f32 1.0, %v110
  %v115 = vmul.f32 %v35, %v111
  %v116 = vmul.f32 %v36, %v112
  %v117 = vmul.f32 %v37, %v113
  %v118 = vmul.f32 %v38, %v114
  %v119 = vadd.f32 %v115, 1.0
  %v120 = vadd.f32 %v116, 1.0
  %v121 = vadd.f32 %v117, 1.0
  %v122 = vadd.f32 %v118, 1.0
  %v123 = vmul.f32 %v23, %v119
  %v124 = vmul.f32 %v24, %v120
  %v125 = vmul.f32 %v25, %v121
  %v126 = vmul.f32 %v26, %v122
  %127 = vst [vmem:[%s2] sm:$0xff] %v123
  %128 = vst [vmem:[%s2 + $0x8] sm:$0xff] %v124
  %129 = vst [vmem:[%s2 + $0x10] sm:$0xff] %v125
  %130 = vst [vmem:[%s2 + $0x18] sm:$0xff] %v126
  // Predicated region
  $region10: #{dfno_block_forward.5} parent=0 // pred_check
    _
  $region11: #{dfno_block_forward.5} parent=0 // pred_check_branch
    %132 = sbr.rel (0) target = $region13
  $region12: #{dfno_block_forward.5} parent=0 // pred_region
    _
  $region13: #{dfno_block_forward.5} parent=0 // pred_fallthru
    _
  // Predicated region
  $region14: #{dfno_block_forward.5} parent=0 // pred_check
    _
  $region15: #{dfno_block_forward.5} parent=0 // pred_check_branch
    %134 = sbr.rel (0) target = $region17
  $region16: #{dfno_block_forward.5} parent=0 // pred_region
    _
  $region17: #{dfno_block_forward.5} parent=0 // pred_fallthru
    _

</llo_original>
